<compile_context>
chip_gen: v5e
topology: v5e:2x2
jax: 0.10.0
libtpu: 0.0.40
codegen_flags: <defaults>
</compile_context>

<pallas_src>
import numpy as np
import jax
import jax.numpy as jnp
from jax import lax
from jax.experimental import pallas as pl
from jax.experimental.pallas import tpu as pltpu


# --------------- static structural constant (built once at import) ----------
def _build_im2col_selection(H=8, W=8, K=3, pad=1):
    # S[h*W+w, s, ky*K+kx] = 1 iff input pixel (h, w) is element (ky, kx) of
    # the zero-padded KxK patch centred at output position s = sy*W + sx.
    S = np.zeros((H * W, H * W, K * K), np.float32)
    for sy in range(H):
        for sx in range(W):
            s = sy * W + sx
            for ky in range(K):
                for kx in range(K):
                    h, w = sy + ky - pad, sx + kx - pad
                    if 0 <= h < H and 0 <= w < W:
                        S[h * W + w, s, ky * K + kx] = 1.0
    return S


_SPATCH = _build_im2col_selection()          # (64, 64, 9)


# ----------------------------- Pallas kernel --------------------------------
def cnn2d_kernel(x_ref, wconv_ref, bconv_ref, w1_ref, b1_ref,
                 w2_ref, b2_ref, w3_ref, b3_ref, out_ref):
    f32, bf16 = jnp.float32, jnp.bfloat16

    x = x_ref[...].astype(bf16)                                        # (TB, 64)

    # conv1 (3x3, pad=1) for all four 2x2-pool taps in ONE fused bf16 matmul.
    # conv_all column layout: d*1024 + c*64 + h*8 + w  (d = pool tap).
    conv_all = jnp.dot(x, wconv_ref[...],
                       preferred_element_type=f32)                     # (TB, 4096)

    # MaxPool2d(kernel_size=2, stride=1): elementwise max over the four taps
    # (128-aligned lane slices).  Columns with h==7 or w==7 are garbage by
    # construction and are discarded by the zero rows folded into w1 below.
    # Bias-add and ReLU commute with max (same bias per channel, monotone).
    t01 = jnp.maximum(conv_all[:, 0:1024], conv_all[:, 1024:2048])
    t23 = jnp.maximum(conv_all[:, 2048:3072], conv_all[:, 3072:4096])
    pooled = jnp.maximum(jnp.maximum(t01, t23) + bconv_ref[...], 0.0)  # (TB, 1024)

    # linear1 (784->128, with the 1024->784 flatten gather folded into w1) -> relu
    h1 = jnp.maximum(
        jnp.dot(pooled.astype(bf16), w1_ref[...],
                preferred_element_type=f32) + b1_ref[...], 0.0)        # (TB, 128)
    # linear2 -> relu
    h2 = jnp.maximum(
        jnp.dot(h1.astype(bf16), w2_ref[...],
                preferred_element_type=f32) + b2_ref[...], 0.0)        # (TB, 64)
    # linear3 (padded to 128 output lanes for unmasked stores) -> sigmoid
    logits = jnp.dot(h2.astype(bf16), w3_ref[...],
                     preferred_element_type=f32) + b3_ref[...]         # (TB, 128)
    out_ref[...] = 1.0 / (1.0 + jnp.exp(-logits))


# --------------------------------- wrapper ----------------------------------
def _cnn2d_forward(x_nchw, params):
    conv_w, conv_b, w1, b1, w2, b2, w3, b3 = params
    B = x_nchw.shape[0]
    f32, bf16 = jnp.float32, jnp.bfloat16

    # ---- offline weight fusion (cheap XLA ops, traced under jit) ----
    # conv1 as a dense map input-pixel -> (channel, output-position).
    wc = conv_w.reshape(16, 9).astype(f32)
    K = jnp.einsum('psk,ck->pcs', jnp.asarray(_SPATCH), wc)            # (64,16,64)
    K = K.reshape(64, 16, 8, 8)
    # Four 2x2 stride-1 pool taps laid out side by side -> (64, 4096).
    taps = []
    for dy, dx in ((0, 0), (0, 1), (1, 0), (1, 1)):
        kd = jnp.pad(K[:, :, dy:, dx:], ((0, 0), (0, 0), (0, dy), (0, dx)))
        taps.append(kd.reshape(64, 1024))
    w_conv = jnp.concatenate(taps, axis=1).astype(bf16)                # (64, 4096)
    bconv = jnp.repeat(conv_b.astype(f32), 64).reshape(1, 1024)        # (1, 1024)

    # linear1 with the 1024->784 valid-position gather folded in:
    # rows at h==7 / w==7 are zero; row index is c*64 + i*8 + j.
    w1f = jnp.pad(w1.reshape(128, 16, 7, 7), ((0, 0), (0, 0), (0, 1), (0, 1)))
    w1f = w1f.reshape(128, 1024).T.astype(bf16)                        # (1024, 128)
    b1r = b1.reshape(1, 128).astype(f32)
    w2t = w2.T.astype(bf16)                                            # (128, 64)
    b2r = b2.reshape(1, 64).astype(f32)
    # Pad the final layer to 128 output lanes (unmasked lane-dense stores).
    w3t = jnp.pad(w3.T, ((0, 0), (0, 64))).astype(bf16)                # (64, 128)
    b3r = jnp.pad(b3.reshape(1, 64), ((0, 0), (0, 64))).astype(f32)    # (1, 128)

    # ---- batch padding / tiling (sublane-friendly, constants stay resident) --
    x_flat = x_nchw.reshape(B, 64).astype(f32)                         # (B, 64)
    tile = min(128, max(8, ((B + 7) // 8) * 8))
    Bp = ((B + tile - 1) // tile) * tile
    if Bp != B:
        x_flat = jnp.pad(x_flat, ((0, Bp - B), (0, 0)))

    out = pl.pallas_call(
        cnn2d_kernel,
        out_shape=jax.ShapeDtypeStruct((Bp, 128), f32),
        grid_spec=pltpu.PrefetchScalarGridSpec(
            num_scalar_prefetch=0,
            grid=(Bp // tile,),
            in_specs=[
                pl.BlockSpec((tile, 64), lambda i: (i, 0)),      # x
                pl.BlockSpec((64, 4096), lambda i: (0, 0)),      # fused conv+pool taps
                pl.BlockSpec((1, 1024), lambda i: (0, 0)),       # conv bias
                pl.BlockSpec((1024, 128), lambda i: (0, 0)),     # linear1 (gather folded)
                pl.BlockSpec((1, 128), lambda i: (0, 0)),
                pl.BlockSpec((128, 64), lambda i: (0, 0)),       # linear2
                pl.BlockSpec((1, 64), lambda i: (0, 0)),
                pl.BlockSpec((64, 128), lambda i: (0, 0)),       # linear3 (lane-padded)
                pl.BlockSpec((1, 128), lambda i: (0, 0)),
            ],
            out_specs=pl.BlockSpec((tile, 128), lambda i: (i, 0)),
        ),
        compiler_params=pltpu.CompilerParams(
            dimension_semantics=("parallel",),
            vmem_limit_bytes=32 * 1024 * 1024,
        ),
    )(x_flat, w_conv, bconv, w1f, b1r, w2t, b2r, w3t, b3r)
    return out[:B, :64]


cnn2d_forward = jax.jit(_cnn2d_forward)


# ------------------------------ pure-JAX reference --------------------------
def reference_forward(x, conv_w, conv_b, w1, b1, w2, b2, w3, b3):
    conv = lax.conv_general_dilated(
        x, conv_w, window_strides=(1, 1), padding=((1, 1), (1, 1)),
        dimension_numbers=("NCHW", "OIHW", "NCHW"),
        precision=lax.Precision.HIGHEST)
    conv = jnp.maximum(conv + conv_b[None, :, None, None], 0.0)
    pooled = lax.reduce_window(conv, -jnp.inf, lax.max,
                               window_dimensions=(1, 1, 2, 2),
                               window_strides=(1, 1, 1, 1), padding="VALID")
    flat = pooled.reshape(x.shape[0], -1)                      # NCHW flatten
    h1 = jnp.maximum(flat @ w1.T + b1, 0.0)
    h2 = jnp.maximum(h1 @ w2.T + b2, 0.0)
    return jax.nn.sigmoid(h2 @ w3.T + b3)


if __name__ == "__main__":
    key = jax.random.PRNGKey(0)
    ks = jax.random.split(key, 9)
    # deterministic synthetic parameters matching the PyTorch module's shapes
    conv_w = 0.2 * jax.random.normal(ks[0], (16, 1, 3, 3), jnp.float32)
    conv_b = 0.1 * jax.random.normal(ks[1], (16,), jnp.float32)
    w1 = 0.05 * jax.random.normal(ks[2], (128, 784), jnp.float32)
    b1 = 0.05 * jax.random.normal(ks[3], (128,), jnp.float32)
    w2 = 0.05 * jax.random.normal(ks[4], (64, 128), jnp.float32)
    b2 = 0.05 * jax.random.normal(ks[5], (64,), jnp.float32)
    w3 = 0.05 * jax.random.normal(ks[6], (64, 64), jnp.float32)
    b3 = 0.05 * jax.random.normal(ks[7], (64,), jnp.float32)
    params = (conv_w, conv_b, w1, b1, w2, b2, w3, b3)

    # batch=2, NCHW input (2, 1, 8, 8): 8x8 implied by Linear(784 = 16*7*7, ...)
    x = jax.random.normal(ks[8], (2, 1, 8, 8), jnp.float32)

    out = jax.block_until_ready(cnn2d_forward(x, params))

    # bf16 MXU path with f32 accumulation vs. f32/HIGHEST reference:
    # tolerance loosened to 2e-2 (observed error is ~1e-3; structural bugs
    # would show up as O(0.1) differences).
    ref = reference_forward(x, *params)
    np.testing.assert_allclose(np.asarray(out), np.asarray(ref),
                               rtol=2e-2, atol=2e-2)
    print("KERNEL_OK")
</pallas_src>

<mosaic_0001>
module attributes {stable_mosaic.version = 11 : i64} {
  func.func @cnn2d_kernel(%arg0: i32, %arg1: memref<8x64xf32, #tpu.memory_space<vmem>>, %arg2: memref<64x4096xbf16, #tpu.memory_space<vmem>>, %arg3: memref<1x1024xf32, #tpu.memory_space<vmem>>, %arg4: memref<1024x128xbf16, #tpu.memory_space<vmem>>, %arg5: memref<1x128xf32, #tpu.memory_space<vmem>>, %arg6: memref<128x64xbf16, #tpu.memory_space<vmem>>, %arg7: memref<1x64xf32, #tpu.memory_space<vmem>>, %arg8: memref<64x128xbf16, #tpu.memory_space<vmem>>, %arg9: memref<1x128xf32, #tpu.memory_space<vmem>>, %arg10: memref<8x128xf32, #tpu.memory_space<vmem>>) attributes {dimension_semantics = [#tpu.dimension_semantics<parallel>], iteration_bounds = array<i64: 1>, scalar_prefetch = 0 : i64, scratch_operands = 0 : i64, tpu.core_type = #tpu.core_type<tc>, window_params = [{transform_indices = @transform_0, window_bounds = array<i64: 8, 64>}, {pipeline_mode = #tpu.pipeline_mode<synchronous>, transform_indices = @transform_1, window_bounds = array<i64: 64, 4096>}, {pipeline_mode = #tpu.pipeline_mode<synchronous>, transform_indices = @transform_2, window_bounds = array<i64: 1, 1024>}, {pipeline_mode = #tpu.pipeline_mode<synchronous>, transform_indices = @transform_3, window_bounds = array<i64: 1024, 128>}, {pipeline_mode = #tpu.pipeline_mode<synchronous>, transform_indices = @transform_4, window_bounds = array<i64: 1, 128>}, {pipeline_mode = #tpu.pipeline_mode<synchronous>, transform_indices = @transform_5, window_bounds = array<i64: 128, 64>}, {pipeline_mode = #tpu.pipeline_mode<synchronous>, transform_indices = @transform_6, window_bounds = array<i64: 1, 64>}, {pipeline_mode = #tpu.pipeline_mode<synchronous>, transform_indices = @transform_7, window_bounds = array<i64: 64, 128>}, {pipeline_mode = #tpu.pipeline_mode<synchronous>, transform_indices = @transform_8, window_bounds = array<i64: 1, 128>}, {transform_indices = @transform_9, window_bounds = array<i64: 8, 128>}]} {
    %c0 = arith.constant 0 : index
    %c0_0 = arith.constant 0 : index
    %0 = vector.load %arg1[%c0, %c0_0] : memref<8x64xf32, #tpu.memory_space<vmem>>, vector<8x64xf32>
    %1 = arith.truncf %0 : vector<8x64xf32> to vector<8x64xbf16>
    %c0_1 = arith.constant 0 : index
    %c0_2 = arith.constant 0 : index
    %2 = vector.load %arg2[%c0_1, %c0_2] : memref<64x4096xbf16, #tpu.memory_space<vmem>>, vector<64x4096xbf16>
    %cst = arith.constant dense<0.000000e+00> : vector<8x4096xf32>
    %3 = tpu.matmul %1, %2, %cst {dimension_numbers = #tpu.dot_dimension_numbers<[1], [0], [0], [1], [0, 0, 1, 1], [], []>} : vector<8x64xbf16>, vector<64x4096xbf16>, vector<8x4096xf32> -> vector<8x4096xf32>
    %4 = vector.extract_strided_slice %3 {offsets = [0, 0], sizes = [8, 1024], strides = [1, 1]} : vector<8x4096xf32> to vector<8x1024xf32>
    %5 = vector.extract_strided_slice %3 {offsets = [0, 1024], sizes = [8, 1024], strides = [1, 1]} : vector<8x4096xf32> to vector<8x1024xf32>
    %6 = arith.maximumf %4, %5 : vector<8x1024xf32>
    %7 = vector.extract_strided_slice %3 {offsets = [0, 2048], sizes = [8, 1024], strides = [1, 1]} : vector<8x4096xf32> to vector<8x1024xf32>
    %8 = vector.extract_strided_slice %3 {offsets = [0, 3072], sizes = [8, 1024], strides = [1, 1]} : vector<8x4096xf32> to vector<8x1024xf32>
    %9 = arith.maximumf %7, %8 : vector<8x1024xf32>
    %10 = arith.maximumf %6, %9 : vector<8x1024xf32>
    %c0_3 = arith.constant 0 : index
    %c0_4 = arith.constant 0 : index
    %11 = vector.load %arg3[%c0_3, %c0_4] : memref<1x1024xf32, #tpu.memory_space<vmem>>, vector<1x1024xf32>
    %12 = vector.broadcast %11 : vector<1x1024xf32> to vector<8x1024xf32>
    %13 = arith.addf %10, %12 : vector<8x1024xf32>
    %cst_5 = arith.constant 0.000000e+00 : f32
    %14 = vector.broadcast %cst_5 : f32 to vector<8x1024xf32>
    %15 = arith.maximumf %13, %14 : vector<8x1024xf32>
    %16 = arith.truncf %15 : vector<8x1024xf32> to vector<8x1024xbf16>
    %c0_6 = arith.constant 0 : index
    %c0_7 = arith.constant 0 : index
    %17 = vector.load %arg4[%c0_6, %c0_7] : memref<1024x128xbf16, #tpu.memory_space<vmem>>, vector<1024x128xbf16>
    %cst_8 = arith.constant dense<0.000000e+00> : vector<8x128xf32>
    %18 = tpu.matmul %16, %17, %cst_8 {dimension_numbers = #tpu.dot_dimension_numbers<[1], [0], [0], [1], [0, 0, 1, 1], [], []>} : vector<8x1024xbf16>, vector<1024x128xbf16>, vector<8x128xf32> -> vector<8x128xf32>
    %c0_9 = arith.constant 0 : index
    %c0_10 = arith.constant 0 : index
    %19 = vector.load %arg5[%c0_9, %c0_10] : memref<1x128xf32, #tpu.memory_space<vmem>>, vector<1x128xf32>
    %20 = vector.broadcast %19 : vector<1x128xf32> to vector<8x128xf32>
    %21 = arith.addf %18, %20 : vector<8x128xf32>
    %cst_11 = arith.constant 0.000000e+00 : f32
    %22 = vector.broadcast %cst_11 : f32 to vector<8x128xf32>
    %23 = arith.maximumf %21, %22 : vector<8x128xf32>
    %24 = arith.truncf %23 : vector<8x128xf32> to vector<8x128xbf16>
    %c0_12 = arith.constant 0 : index
    %c0_13 = arith.constant 0 : index
    %25 = vector.load %arg6[%c0_12, %c0_13] : memref<128x64xbf16, #tpu.memory_space<vmem>>, vector<128x64xbf16>
    %cst_14 = arith.constant dense<0.000000e+00> : vector<8x64xf32>
    %26 = tpu.matmul %24, %25, %cst_14 {dimension_numbers = #tpu.dot_dimension_numbers<[1], [0], [0], [1], [0, 0, 1, 1], [], []>} : vector<8x128xbf16>, vector<128x64xbf16>, vector<8x64xf32> -> vector<8x64xf32>
    %c0_15 = arith.constant 0 : index
    %c0_16 = arith.constant 0 : index
    %27 = vector.load %arg7[%c0_15, %c0_16] : memref<1x64xf32, #tpu.memory_space<vmem>>, vector<1x64xf32>
    %28 = vector.broadcast %27 : vector<1x64xf32> to vector<8x64xf32>
    %29 = arith.addf %26, %28 : vector<8x64xf32>
    %cst_17 = arith.constant 0.000000e+00 : f32
    %30 = vector.broadcast %cst_17 : f32 to vector<8x64xf32>
    %31 = arith.maximumf %29, %30 : vector<8x64xf32>
    %32 = arith.truncf %31 : vector<8x64xf32> to vector<8x64xbf16>
    %c0_18 = arith.constant 0 : index
    %c0_19 = arith.constant 0 : index
    %33 = vector.load %arg8[%c0_18, %c0_19] : memref<64x128xbf16, #tpu.memory_space<vmem>>, vector<64x128xbf16>
    %cst_20 = arith.constant dense<0.000000e+00> : vector<8x128xf32>
    %34 = tpu.matmul %32, %33, %cst_20 {dimension_numbers = #tpu.dot_dimension_numbers<[1], [0], [0], [1], [0, 0, 1, 1], [], []>} : vector<8x64xbf16>, vector<64x128xbf16>, vector<8x128xf32> -> vector<8x128xf32>
    %c0_21 = arith.constant 0 : index
    %c0_22 = arith.constant 0 : index
    %35 = vector.load %arg9[%c0_21, %c0_22] : memref<1x128xf32, #tpu.memory_space<vmem>>, vector<1x128xf32>
    %36 = vector.broadcast %35 : vector<1x128xf32> to vector<8x128xf32>
    %37 = arith.addf %34, %36 : vector<8x128xf32>
    %cst_23 = arith.constant 0.000000e+00 : f32
    %38 = vector.broadcast %cst_23 : f32 to vector<8x128xf32>
    %39 = arith.subf %38, %37 : vector<8x128xf32>
    %40 = math.exp %39 : vector<8x128xf32>
    %cst_24 = arith.constant 1.000000e+00 : f32
    %41 = vector.broadcast %cst_24 : f32 to vector<8x128xf32>
    %42 = arith.addf %41, %40 : vector<8x128xf32>
    %cst_25 = arith.constant 1.000000e+00 : f32
    %43 = vector.broadcast %cst_25 : f32 to vector<8x128xf32>
    %44 = arith.divf %43, %42 : vector<8x128xf32>
    %c0_26 = arith.constant 0 : index
    %c0_27 = arith.constant 0 : index
    %45 = vector.load %arg10[%c0_26, %c0_27] : memref<8x128xf32, #tpu.memory_space<vmem>>, vector<8x128xf32>
    tpu.vector_store %arg10[%c0_26, %c0_27], %44 {strides = array<i32>} : memref<8x128xf32, #tpu.memory_space<vmem>>, vector<8x128xf32>,
    return
  }
  func.func @transform_0(%arg0: i32) -> (i32, i32) {
    %c0_i32 = arith.constant 0 : i32
    %c0_i32_0 = arith.constant 0 : i32
    return %arg0, %c0_i32 : i32, i32
  }
  func.func @transform_1(%arg0: i32) -> (i32, i32) {
    %c0_i32 = arith.constant 0 : i32
    %c0_i32_0 = arith.constant 0 : i32
    %c0_i32_1 = arith.constant 0 : i32
    return %c0_i32, %c0_i32_0 : i32, i32
  }
  func.func @transform_2(%arg0: i32) -> (i32, i32) {
    %c0_i32 = arith.constant 0 : i32
    %c0_i32_0 = arith.constant 0 : i32
    %c0_i32_1 = arith.constant 0 : i32
    return %c0_i32, %c0_i32_0 : i32, i32
  }
  func.func @transform_3(%arg0: i32) -> (i32, i32) {
    %c0_i32 = arith.constant 0 : i32
    %c0_i32_0 = arith.constant 0 : i32
    %c0_i32_1 = arith.constant 0 : i32
    return %c0_i32, %c0_i32_0 : i32, i32
  }
  func.func @transform_4(%arg0: i32) -> (i32, i32) {
    %c0_i32 = arith.constant 0 : i32
    %c0_i32_0 = arith.constant 0 : i32
    %c0_i32_1 = arith.constant 0 : i32
    return %c0_i32, %c0_i32_0 : i32, i32
  }
  func.func @transform_5(%arg0: i32) -> (i32, i32) {
    %c0_i32 = arith.constant 0 : i32
    %c0_i32_0 = arith.constant 0 : i32
    %c0_i32_1 = arith.constant 0 : i32
    return %c0_i32, %c0_i32_0 : i32, i32
  }
  func.func @transform_6(%arg0: i32) -> (i32, i32) {
    %c0_i32 = arith.constant 0 : i32
    %c0_i32_0 = arith.constant 0 : i32
    %c0_i32_1 = arith.constant 0 : i32
    return %c0_i32, %c0_i32_0 : i32, i32
  }
  func.func @transform_7(%arg0: i32) -> (i32, i32) {
    %c0_i32 = arith.constant 0 : i32
    %c0_i32_0 = arith.constant 0 : i32
    %c0_i32_1 = arith.constant 0 : i32
    return %c0_i32, %c0_i32_0 : i32, i32
  }
  func.func @transform_8(%arg0: i32) -> (i32, i32) {
    %c0_i32 = arith.constant 0 : i32
    %c0_i32_0 = arith.constant 0 : i32
    %c0_i32_1 = arith.constant 0 : i32
    return %c0_i32, %c0_i32_0 : i32, i32
  }
  func.func @transform_9(%arg0: i32) -> (i32, i32) {
    %c0_i32 = arith.constant 0 : i32
    %c0_i32_0 = arith.constant 0 : i32
    return %arg0, %c0_i32 : i32, i32
  }
}

</mosaic_0001>

<llo_original>
// kernel: _cnn2d_forward.1
$region0: #{_cnn2d_forward.1}
  #allocation0 [shape = 'u32[]', space=smem, size = 0x4, offset = 0x4, fixed_abs, tag = 'smem constant byte address 0x4 - core index']
  #allocation1 [shape = 'u32[72,128]{1,0:T(1,128)}', space=vmem, size = 0x9000, scoped, tag = 'internal scratch']
  %s0 = inlined_call_operand.vmem [shape: f32[8,64], index: 0, kind: input, shape index: {}]
  %s1 = inlined_call_operand.vmem [shape: bf16[64,4096], index: 1, kind: input, shape index: {}]
  %s2 = inlined_call_operand.vmem [shape: f32[1,1024], index: 2, kind: input, shape index: {}]
  %s3 = inlined_call_operand.vmem [shape: bf16[1024,128], index: 3, kind: input, shape index: {}]
  %s4 = inlined_call_operand.vmem [shape: f32[1,128], index: 4, kind: input, shape index: {}]
  %s5 = inlined_call_operand.vmem [shape: bf16[128,64], index: 5, kind: input, shape index: {}]
  %s6 = inlined_call_operand.vmem [shape: f32[1,64], index: 6, kind: input, shape index: {}]
  %s7 = inlined_call_operand.vmem [shape: bf16[64,128], index: 7, kind: input, shape index: {}]
  %s8 = inlined_call_operand.vmem [shape: f32[1,128], index: 8, kind: input, shape index: {}]
  %s9 = inlined_call_operand.vmem [shape: f32[8,128], index: 9, kind: output, shape index: {}]
  %s10 = sld [smem:[#allocation0]]
  $region46: #{_cnn2d_forward.1} parent=0
    _
  %s12 = ssub.s32 1, %s10
  %s13 = scalar_select 0, %s12, %s10
  // Predicated region
  $region2: #{_cnn2d_forward.1} parent=0 // pred_check
    _
  $region3: #{_cnn2d_forward.1} parent=0 // pred_check_branch
    %15 = sbr.rel (0) target = $region5
  $region4: #{_cnn2d_forward.1} parent=0 // pred_region
    _
  $region5: #{_cnn2d_forward.1} parent=0 // pred_fallthru
    _
  // Predicated region
  $region6: #{_cnn2d_forward.1} parent=0 // pred_check
    _
  $region7: #{_cnn2d_forward.1} parent=0 // pred_check_branch
    %17 = sbr.rel (0) target = $region9
  $region8: #{_cnn2d_forward.1} parent=0 // pred_region
    _
  $region9: #{_cnn2d_forward.1} parent=0 // pred_fallthru
    _
  // Predicated region
  $region10: #{_cnn2d_forward.1} parent=0 // pred_check
    _
  $region11: #{_cnn2d_forward.1} parent=0 // pred_check_branch
    %19 = sbr.rel (0) target = $region13
  $region12: #{_cnn2d_forward.1} parent=0 // pred_region
    _
  $region13: #{_cnn2d_forward.1} parent=0 // pred_fallthru
    _
  // Predicated region
  $region14: #{_cnn2d_forward.1} parent=0 // pred_check
    _
  $region15: #{_cnn2d_forward.1} parent=0 // pred_check_branch
    %21 = sbr.rel (0) target = $region17
  $region16: #{_cnn2d_forward.1} parent=0 // pred_region
    _
  $region17: #{_cnn2d_forward.1} parent=0 // pred_fallthru
    _
  // Predicated region
  $region18: #{_cnn2d_forward.1} parent=0 // pred_check
    _
  $region19: #{_cnn2d_forward.1} parent=0 // pred_check_branch
    %23 = sbr.rel (0) target = $region21
  $region20: #{_cnn2d_forward.1} parent=0 // pred_region
    _
  $region21: #{_cnn2d_forward.1} parent=0 // pred_fallthru
    _
  // Predicated region
  $region22: #{_cnn2d_forward.1} parent=0 // pred_check
    _
  $region23: #{_cnn2d_forward.1} parent=0 // pred_check_branch
    %25 = sbr.rel (0) target = $region25
  $region24: #{_cnn2d_forward.1} parent=0 // pred_region
    _
  $region25: #{_cnn2d_forward.1} parent=0 // pred_fallthru
    _
  // Predicated region
  $region26: #{_cnn2d_forward.1} parent=0 // pred_check
    _
  $region27: #{_cnn2d_forward.1} parent=0 // pred_check_branch
    %27 = sbr.rel (0) target = $region29
  $region28: #{_cnn2d_forward.1} parent=0 // pred_region
    _
  $region29: #{_cnn2d_forward.1} parent=0 // pred_fallthru
    _
  // Predicated region
  $region30: #{_cnn2d_forward.1} parent=0 // pred_check
    _
  $region31: #{_cnn2d_forward.1} parent=0 // pred_check_branch
    %29 = sbr.rel (0) target = $region33
  $region32: #{_cnn2d_forward.1} parent=0 // pred_region
    _
  $region33: #{_cnn2d_forward.1} parent=0 // pred_fallthru
    _
  // Predicated region
  $region34: #{_cnn2d_forward.1} parent=0 // pred_check
    _
  $region35: #{_cnn2d_forward.1} parent=0 // pred_check_branch
    %31 = sbr.rel (0) target = $region37
  $region36: #{_cnn2d_forward.1} parent=0 // pred_region
    _
  $region37: #{_cnn2d_forward.1} parent=0 // pred_fallthru
    _
  %v33 = vld [vmem:[%s0] sm:$0xff]
  %v34 = vpack.c.bf16 %v33, %v33
  %v35 = vld [vmem:[%s1] sm:$0xff]
  %v36 = vld [vmem:[%s1 + $0x8] sm:$0xff]
  %v37 = vld [vmem:[%s1 + $0x10] sm:$0xff]
  %v38 = vld [vmem:[%s1 + $0x18] sm:$0xff]
  %v39 = vld [vmem:[%s1 + $0x20] sm:$0xff]
  %v40 = vld [vmem:[%s1 + $0x28] sm:$0xff]
  %v41 = vld [vmem:[%s1 + $0x30] sm:$0xff]
  %v42 = vld [vmem:[%s1 + $0x38] sm:$0xff]
  %v43 = vld [vmem:[%s1 + $0x40] sm:$0xff]
  %v44 = vld [vmem:[%s1 + $0x48] sm:$0xff]
  %v45 = vld [vmem:[%s1 + $0x50] sm:$0xff]
  %v46 = vld [vmem:[%s1 + $0x58] sm:$0xff]
  %v47 = vld [vmem:[%s1 + $0x60] sm:$0xff]
  %v48 = vld [vmem:[%s1 + $0x68] sm:$0xff]
  %v49 = vld [vmem:[%s1 + $0x70] sm:$0xff]
  %v50 = vld [vmem:[%s1 + $0x78] sm:$0xff]
  %v51 = vld [vmem:[%s1 + $0x80] sm:$0xff]
  %v52 = vld [vmem:[%s1 + $0x88] sm:$0xff]
  %v53 = vld [vmem:[%s1 + $0x90] sm:$0xff]
  %v54 = vld [vmem:[%s1 + $0x98] sm:$0xff]
  %v55 = vld [vmem:[%s1 + $0xa0] sm:$0xff]
  %v56 = vld [vmem:[%s1 + $0xa8] sm:$0xff]
  %v57 = vld [vmem:[%s1 + $0xb0] sm:$0xff]
  %v58 = vld [vmem:[%s1 + $0xb8] sm:$0xff]
  %v59 = vld [vmem:[%s1 + $0xc0] sm:$0xff]
  %v60 = vld [vmem:[%s1 + $0xc8] sm:$0xff]
  %v61 = vld [vmem:[%s1 + $0xd0] sm:$0xff]
  %v62 = vld [vmem:[%s1 + $0xd8] sm:$0xff]
  %v63 = vld [vmem:[%s1 + $0xe0] sm:$0xff]
  %v64 = vld [vmem:[%s1 + $0xe8] sm:$0xff]
  %v65 = vld [vmem:[%s1 + $0xf0] sm:$0xff]
  %v66 = vld [vmem:[%s1 + $0xf8] sm:$0xff]
  %v67 = vld [vmem:[%s1 + $0x100] sm:$0xff]
  %v68 = vld [vmem:[%s1 + $0x108] sm:$0xff]
  %v69 = vld [vmem:[%s1 + $0x110] sm:$0xff]
  %v70 = vld [vmem:[%s1 + $0x118] sm:$0xff]
  %v71 = vld [vmem:[%s1 + $0x120] sm:$0xff]
  %v72 = vld [vmem:[%s1 + $0x128] sm:$0xff]
  %v73 = vld [vmem:[%s1 + $0x130] sm:$0xff]
  %v74 = vld [vmem:[%s1 + $0x138] sm:$0xff]
  %v75 = vld [vmem:[%s1 + $0x140] sm:$0xff]
  %v76 = vld [vmem:[%s1 + $0x148] sm:$0xff]
  %v77 = vld [vmem:[%s1 + $0x150] sm:$0xff]
  %v78 = vld [vmem:[%s1 + $0x158] sm:$0xff]
  %v79 = vld [vmem:[%s1 + $0x160] sm:$0xff]
  %v80 = vld [vmem:[%s1 + $0x168] sm:$0xff]
  %v81 = vld [vmem:[%s1 + $0x170] sm:$0xff]
  %v82 = vld [vmem:[%s1 + $0x178] sm:$0xff]
  %v83 = vld [vmem:[%s1 + $0x180] sm:$0xff]
  %v84 = vld [vmem:[%s1 + $0x188] sm:$0xff]
  %v85 = vld [vmem:[%s1 + $0x190] sm:$0xff]
  %v86 = vld [vmem:[%s1 + $0x198] sm:$0xff]
  %v87 = vld [vmem:[%s1 + $0x1a0] sm:$0xff]
  %v88 = vld [vmem:[%s1 + $0x1a8] sm:$0xff]
  %v89 = vld [vmem:[%s1 + $0x1b0] sm:$0xff]
  %v90 = vld [vmem:[%s1 + $0x1b8] sm:$0xff]
  %v91 = vld [vmem:[%s1 + $0x1c0] sm:$0xff]
  %v92 = vld [vmem:[%s1 + $0x1c8] sm:$0xff]
  %v93 = vld [vmem:[%s1 + $0x1d0] sm:$0xff]
  %v94 = vld [vmem:[%s1 + $0x1d8] sm:$0xff]
  %v95 = vld [vmem:[%s1 + $0x1e0] sm:$0xff]
  %v96 = vld [vmem:[%s1 + $0x1e8] sm:$0xff]
  %v97 = vld [vmem:[%s1 + $0x1f0] sm:$0xff]
  %v98 = vld [vmem:[%s1 + $0x1f8] sm:$0xff]
  %v99 = vld [vmem:[%s1 + $0x200] sm:$0xff]
  %v100 = vld [vmem:[%s1 + $0x208] sm:$0xff]
  %v101 = vld [vmem:[%s1 + $0x210] sm:$0xff]
  %v102 = vld [vmem:[%s1 + $0x218] sm:$0xff]
  %v103 = vld [vmem:[%s1 + $0x220] sm:$0xff]
  %v104 = vld [vmem:[%s1 + $0x228] sm:$0xff]
  %v105 = vld [vmem:[%s1 + $0x230] sm:$0xff]
  %v106 = vld [vmem:[%s1 + $0x238] sm:$0xff]
  %v107 = vld [vmem:[%s1 + $0x240] sm:$0xff]
  %v108 = vld [vmem:[%s1 + $0x248] sm:$0xff]
  %v109 = vld [vmem:[%s1 + $0x250] sm:$0xff]
  %v110 = vld [vmem:[%s1 + $0x258] sm:$0xff]
  %v111 = vld [vmem:[%s1 + $0x260] sm:$0xff]
  %v112 = vld [vmem:[%s1 + $0x268] sm:$0xff]
  %v113 = vld [vmem:[%s1 + $0x270] sm:$0xff]
  %v114 = vld [vmem:[%s1 + $0x278] sm:$0xff]
  %v115 = vld [vmem:[%s1 + $0x280] sm:$0xff]
  %v116 = vld [vmem:[%s1 + $0x288] sm:$0xff]
  %v117 = vld [vmem:[%s1 + $0x290] sm:$0xff]
  %v118 = vld [vmem:[%s1 + $0x298] sm:$0xff]
  %v119 = vld [vmem:[%s1 + $0x2a0] sm:$0xff]
  %v120 = vld [vmem:[%s1 + $0x2a8] sm:$0xff]
  %v121 = vld [vmem:[%s1 + $0x2b0] sm:$0xff]
  %v122 = vld [vmem:[%s1 + $0x2b8] sm:$0xff]
  %v123 = vld [vmem:[%s1 + $0x2c0] sm:$0xff]
  %v124 = vld [vmem:[%s1 + $0x2c8] sm:$0xff]
  %v125 = vld [vmem:[%s1 + $0x2d0] sm:$0xff]
  %v126 = vld [vmem:[%s1 + $0x2d8] sm:$0xff]
  %v127 = vld [vmem:[%s1 + $0x2e0] sm:$0xff]
  %v128 = vld [vmem:[%s1 + $0x2e8] sm:$0xff]
  %v129 = vld [vmem:[%s1 + $0x2f0] sm:$0xff]
  %v130 = vld [vmem:[%s1 + $0x2f8] sm:$0xff]
  %v131 = vld [vmem:[%s1 + $0x300] sm:$0xff]
  %v132 = vld [vmem:[%s1 + $0x308] sm:$0xff]
  %v133 = vld [vmem:[%s1 + $0x310] sm:$0xff]
  %v134 = vld [vmem:[%s1 + $0x318] sm:$0xff]
  %v135 = vld [vmem:[%s1 + $0x320] sm:$0xff]
  %v136 = vld [vmem:[%s1 + $0x328] sm:$0xff]
  %v137 = vld [vmem:[%s1 + $0x330] sm:$0xff]
  %v138 = vld [vmem:[%s1 + $0x338] sm:$0xff]
  %v139 = vld [vmem:[%s1 + $0x340] sm:$0xff]
  %v140 = vld [vmem:[%s1 + $0x348] sm:$0xff]
  %v141 = vld [vmem:[%s1 + $0x350] sm:$0xff]
  %v142 = vld [vmem:[%s1 + $0x358] sm:$0xff]
  %v143 = vld [vmem:[%s1 + $0x360] sm:$0xff]
  %v144 = vld [vmem:[%s1 + $0x368] sm:$0xff]
  %v145 = vld [vmem:[%s1 + $0x370] sm:$0xff]
  %v146 = vld [vmem:[%s1 + $0x378] sm:$0xff]
  %v147 = vld [vmem:[%s1 + $0x380] sm:$0xff]
  %v148 = vld [vmem:[%s1 + $0x388] sm:$0xff]
  %v149 = vld [vmem:[%s1 + $0x390] sm:$0xff]
  %v150 = vld [vmem:[%s1 + $0x398] sm:$0xff]
  %v151 = vld [vmem:[%s1 + $0x3a0] sm:$0xff]
  %v152 = vld [vmem:[%s1 + $0x3a8] sm:$0xff]
  %v153 = vld [vmem:[%s1 + $0x3b0] sm:$0xff]
  %v154 = vld [vmem:[%s1 + $0x3b8] sm:$0xff]
  %v155 = vld [vmem:[%s1 + $0x3c0] sm:$0xff]
  %v156 = vld [vmem:[%s1 + $0x3c8] sm:$0xff]
  %v157 = vld [vmem:[%s1 + $0x3d0] sm:$0xff]
  %v158 = vld [vmem:[%s1 + $0x3d8] sm:$0xff]
  %v159 = vld [vmem:[%s1 + $0x3e0] sm:$0xff]
  %v160 = vld [vmem:[%s1 + $0x3e8] sm:$0xff]
  %v161 = vld [vmem:[%s1 + $0x3f0] sm:$0xff]
  %v162 = vld [vmem:[%s1 + $0x3f8] sm:$0xff]
  %v291 = vunpack.c.l.b16 %v35
  %v292 = vunpack.c.h.b16 %v35
  %v293 = vunpack.c.l.b16 %v36
  %v294 = vunpack.c.h.b16 %v36
  %v295 = vunpack.c.l.b16 %v37
  %v296 = vunpack.c.h.b16 %v37
  %v297 = vunpack.c.l.b16 %v38
  %v298 = vunpack.c.h.b16 %v38
  %v299 = vunpack.c.l.b16 %v39
  %v300 = vunpack.c.h.b16 %v39
  %v301 = vunpack.c.l.b16 %v40
  %v302 = vunpack.c.h.b16 %v40
  %v303 = vunpack.c.l.b16 %v41
  %v304 = vunpack.c.h.b16 %v41
  %v305 = vunpack.c.l.b16 %v42
  %v306 = vunpack.c.h.b16 %v42
  %v307 = vunpack.c.l.b16 %v43
  %v308 = vunpack.c.h.b16 %v43
  %v309 = vunpack.c.l.b16 %v44
  %v310 = vunpack.c.h.b16 %v44
  %v311 = vunpack.c.l.b16 %v45
  %v312 = vunpack.c.h.b16 %v45
  %v313 = vunpack.c.l.b16 %v46
  %v314 = vunpack.c.h.b16 %v46
  %v315 = vunpack.c.l.b16 %v47
  %v316 = vunpack.c.h.b16 %v47
  %v317 = vunpack.c.l.b16 %v48
  %v318 = vunpack.c.h.b16 %v48
  %v319 = vunpack.c.l.b16 %v49
  %v320 = vunpack.c.h.b16 %v49
  %v321 = vunpack.c.l.b16 %v50
  %v322 = vunpack.c.h.b16 %v50
  %v323 = vunpack.c.l.b16 %v51
  %v324 = vunpack.c.h.b16 %v51
  %v325 = vunpack.c.l.b16 %v52
  %v326 = vunpack.c.h.b16 %v52
  %v327 = vunpack.c.l.b16 %v53
  %v328 = vunpack.c.h.b16 %v53
  %v329 = vunpack.c.l.b16 %v54
  %v330 = vunpack.c.h.b16 %v54
  %v331 = vunpack.c.l.b16 %v55
  %v332 = vunpack.c.h.b16 %v55
  %v333 = vunpack.c.l.b16 %v56
  %v334 = vunpack.c.h.b16 %v56
  %v335 = vunpack.c.l.b16 %v57
  %v336 = vunpack.c.h.b16 %v57
  %v337 = vunpack.c.l.b16 %v58
  %v338 = vunpack.c.h.b16 %v58
  %v339 = vunpack.c.l.b16 %v59
  %v340 = vunpack.c.h.b16 %v59
  %v341 = vunpack.c.l.b16 %v60
  %v342 = vunpack.c.h.b16 %v60
  %v343 = vunpack.c.l.b16 %v61
  %v344 = vunpack.c.h.b16 %v61
  %v345 = vunpack.c.l.b16 %v62
  %v346 = vunpack.c.h.b16 %v62
  %v347 = vunpack.c.l.b16 %v63
  %v348 = vunpack.c.h.b16 %v63
  %v349 = vunpack.c.l.b16 %v64
  %v350 = vunpack.c.h.b16 %v64
  %v351 = vunpack.c.l.b16 %v65
  %v352 = vunpack.c.h.b16 %v65
  %v353 = vunpack.c.l.b16 %v66
  %v354 = vunpack.c.h.b16 %v66
  %v355 = vunpack.c.l.b16 %v67
  %v356 = vunpack.c.h.b16 %v67
  %v357 = vunpack.c.l.b16 %v68
  %v358 = vunpack.c.h.b16 %v68
  %v359 = vunpack.c.l.b16 %v69
  %v360 = vunpack.c.h.b16 %v69
  %v361 = vunpack.c.l.b16 %v70
  %v362 = vunpack.c.h.b16 %v70
  %v363 = vunpack.c.l.b16 %v71
  %v364 = vunpack.c.h.b16 %v71
  %v365 = vunpack.c.l.b16 %v72
  %v366 = vunpack.c.h.b16 %v72
  %v367 = vunpack.c.l.b16 %v73
  %v368 = vunpack.c.h.b16 %v73
  %v369 = vunpack.c.l.b16 %v74
  %v370 = vunpack.c.h.b16 %v74
  %v371 = vunpack.c.l.b16 %v75
  %v372 = vunpack.c.h.b16 %v75
  %v373 = vunpack.c.l.b16 %v76
  %v374 = vunpack.c.h.b16 %v76
  %v375 = vunpack.c.l.b16 %v77
  %v376 = vunpack.c.h.b16 %v77
  %v377 = vunpack.c.l.b16 %v78
  %v378 = vunpack.c.h.b16 %v78
  %v379 = vunpack.c.l.b16 %v79
  %v380 = vunpack.c.h.b16 %v79
  %v381 = vunpack.c.l.b16 %v80
  %v382 = vunpack.c.h.b16 %v80
  %v383 = vunpack.c.l.b16 %v81
  %v384 = vunpack.c.h.b16 %v81
  %v385 = vunpack.c.l.b16 %v82
  %v386 = vunpack.c.h.b16 %v82
  %v387 = vunpack.c.l.b16 %v83
  %v388 = vunpack.c.h.b16 %v83
  %v389 = vunpack.c.l.b16 %v84
  %v390 = vunpack.c.h.b16 %v84
  %v391 = vunpack.c.l.b16 %v85
  %v392 = vunpack.c.h.b16 %v85
  %v393 = vunpack.c.l.b16 %v86
  %v394 = vunpack.c.h.b16 %v86
  %v395 = vunpack.c.l.b16 %v87
  %v396 = vunpack.c.h.b16 %v87
  %v397 = vunpack.c.l.b16 %v88
  %v398 = vunpack.c.h.b16 %v88
  %v399 = vunpack.c.l.b16 %v89
  %v400 = vunpack.c.h.b16 %v89
  %v401 = vunpack.c.l.b16 %v90
  %v402 = vunpack.c.h.b16 %v90
  %v403 = vunpack.c.l.b16 %v91
  %v404 = vunpack.c.h.b16 %v91
  %v405 = vunpack.c.l.b16 %v92
  %v406 = vunpack.c.h.b16 %v92
  %v407 = vunpack.c.l.b16 %v93
  %v408 = vunpack.c.h.b16 %v93
  %v409 = vunpack.c.l.b16 %v94
  %v410 = vunpack.c.h.b16 %v94
  %v411 = vunpack.c.l.b16 %v95
  %v412 = vunpack.c.h.b16 %v95
  %v413 = vunpack.c.l.b16 %v96
  %v414 = vunpack.c.h.b16 %v96
  %v415 = vunpack.c.l.b16 %v97
  %v416 = vunpack.c.h.b16 %v97
  %v417 = vunpack.c.l.b16 %v98
  %v418 = vunpack.c.h.b16 %v98
  %v419 = vunpack.c.l.b16 %v99
  %v420 = vunpack.c.h.b16 %v99
  %v421 = vunpack.c.l.b16 %v100
  %v422 = vunpack.c.h.b16 %v100
  %v423 = vunpack.c.l.b16 %v101
  %v424 = vunpack.c.h.b16 %v101
  %v425 = vunpack.c.l.b16 %v102
  %v426 = vunpack.c.h.b16 %v102
  %v427 = vunpack.c.l.b16 %v103
  %v428 = vunpack.c.h.b16 %v103
  %v429 = vunpack.c.l.b16 %v104
  %v430 = vunpack.c.h.b16 %v104
  %v431 = vunpack.c.l.b16 %v105
  %v432 = vunpack.c.h.b16 %v105
  %v433 = vunpack.c.l.b16 %v106
  %v434 = vunpack.c.h.b16 %v106
  %v435 = vunpack.c.l.b16 %v107
  %v436 = vunpack.c.h.b16 %v107
  %v437 = vunpack.c.l.b16 %v108
  %v438 = vunpack.c.h.b16 %v108
  %v439 = vunpack.c.l.b16 %v109
  %v440 = vunpack.c.h.b16 %v109
  %v441 = vunpack.c.l.b16 %v110
  %v442 = vunpack.c.h.b16 %v110
  %v443 = vunpack.c.l.b16 %v111
  %v444 = vunpack.c.h.b16 %v111
  %v445 = vunpack.c.l.b16 %v112
  %v446 = vunpack.c.h.b16 %v112
  %v447 = vunpack.c.l.b16 %v113
  %v448 = vunpack.c.h.b16 %v113
  %v449 = vunpack.c.l.b16 %v114
  %v450 = vunpack.c.h.b16 %v114
  %v451 = vunpack.c.l.b16 %v115
  %v452 = vunpack.c.h.b16 %v115
  %v453 = vunpack.c.l.b16 %v116
  %v454 = vunpack.c.h.b16 %v116
  %v455 = vunpack.c.l.b16 %v117
  %v456 = vunpack.c.h.b16 %v117
  %v457 = vunpack.c.l.b16 %v118
  %v458 = vunpack.c.h.b16 %v118
  %v459 = vunpack.c.l.b16 %v119
  %v460 = vunpack.c.h.b16 %v119
  %v461 = vunpack.c.l.b16 %v120
  %v462 = vunpack.c.h.b16 %v120
  %v463 = vunpack.c.l.b16 %v121
  %v464 = vunpack.c.h.b16 %v121
  %v465 = vunpack.c.l.b16 %v122
  %v466 = vunpack.c.h.b16 %v122
  %v467 = vunpack.c.l.b16 %v123
  %v468 = vunpack.c.h.b16 %v123
  %v469 = vunpack.c.l.b16 %v124
  %v470 = vunpack.c.h.b16 %v124
  %v471 = vunpack.c.l.b16 %v125
  %v472 = vunpack.c.h.b16 %v125
  %v473 = vunpack.c.l.b16 %v126
  %v474 = vunpack.c.h.b16 %v126
  %v475 = vunpack.c.l.b16 %v127
  %v476 = vunpack.c.h.b16 %v127
  %v477 = vunpack.c.l.b16 %v128
  %v478 = vunpack.c.h.b16 %v128
  %v479 = vunpack.c.l.b16 %v129
  %v480 = vunpack.c.h.b16 %v129
  %v481 = vunpack.c.l.b16 %v130
  %v482 = vunpack.c.h.b16 %v130
  %v483 = vunpack.c.l.b16 %v131
  %v484 = vunpack.c.h.b16 %v131
  %v485 = vunpack.c.l.b16 %v132
  %v486 = vunpack.c.h.b16 %v132
  %v487 = vunpack.c.l.b16 %v133
  %v488 = vunpack.c.h.b16 %v133
  %v489 = vunpack.c.l.b16 %v134
  %v490 = vunpack.c.h.b16 %v134
  %v491 = vunpack.c.l.b16 %v135
  %v492 = vunpack.c.h.b16 %v135
  %v493 = vunpack.c.l.b16 %v136
  %v494 = vunpack.c.h.b16 %v136
  %v495 = vunpack.c.l.b16 %v137
  %v496 = vunpack.c.h.b16 %v137
  %v497 = vunpack.c.l.b16 %v138
  %v498 = vunpack.c.h.b16 %v138
  %v499 = vunpack.c.l.b16 %v139
  %v500 = vunpack.c.h.b16 %v139
  %v501 = vunpack.c.l.b16 %v140
  %v502 = vunpack.c.h.b16 %v140
  %v503 = vunpack.c.l.b16 %v141
  %v504 = vunpack.c.h.b16 %v141
  %v505 = vunpack.c.l.b16 %v142
  %v506 = vunpack.c.h.b16 %v142
  %v507 = vunpack.c.l.b16 %v143
  %v508 = vunpack.c.h.b16 %v143
  %v509 = vunpack.c.l.b16 %v144
  %v510 = vunpack.c.h.b16 %v144
  %v511 = vunpack.c.l.b16 %v145
  %v512 = vunpack.c.h.b16 %v145
  %v513 = vunpack.c.l.b16 %v146
  %v514 = vunpack.c.h.b16 %v146
  %v515 = vunpack.c.l.b16 %v147
  %v516 = vunpack.c.h.b16 %v147
  %v517 = vunpack.c.l.b16 %v148
  %v518 = vunpack.c.h.b16 %v148
  %v519 = vunpack.c.l.b16 %v149
  %v520 = vunpack.c.h.b16 %v149
  %v521 = vunpack.c.l.b16 %v150
  %v522 = vunpack.c.h.b16 %v150
  %v523 = vunpack.c.l.b16 %v151
  %v524 = vunpack.c.h.b16 %v151
  %v525 = vunpack.c.l.b16 %v152
  %v526 = vunpack.c.h.b16 %v152
  %v527 = vunpack.c.l.b16 %v153
  %v528 = vunpack.c.h.b16 %v153
  %v529 = vunpack.c.l.b16 %v154
  %v530 = vunpack.c.h.b16 %v154
  %v531 = vunpack.c.l.b16 %v155
  %v532 = vunpack.c.h.b16 %v155
  %v533 = vunpack.c.l.b16 %v156
  %v534 = vunpack.c.h.b16 %v156
  %v535 = vunpack.c.l.b16 %v157
  %v536 = vunpack.c.h.b16 %v157
  %v537 = vunpack.c.l.b16 %v158
  %v538 = vunpack.c.h.b16 %v158
  %v539 = vunpack.c.l.b16 %v159
  %v540 = vunpack.c.h.b16 %v159
  %v541 = vunpack.c.l.b16 %v160
  %v542 = vunpack.c.h.b16 %v160
  %v543 = vunpack.c.l.b16 %v161
  %v544 = vunpack.c.h.b16 %v161
  %v545 = vunpack.c.l.b16 %v162
  %v546 = vunpack.c.h.b16 %v162
  %v547 = vpack.c.b16 %v323, %v291
  %v548 = vpack.c.b16 %v324, %v292
  %v549 = vpack.c.b16 %v325, %v293
  %v550 = vpack.c.b16 %v326, %v294
  %v551 = vpack.c.b16 %v327, %v295
  %v552 = vpack.c.b16 %v328, %v296
  %v553 = vpack.c.b16 %v329, %v297
  %v554 = vpack.c.b16 %v330, %v298
  %v555 = vpack.c.b16 %v331, %v299
  %v556 = vpack.c.b16 %v332, %v300
  %v557 = vpack.c.b16 %v333, %v301
  %v558 = vpack.c.b16 %v334, %v302
  %v559 = vpack.c.b16 %v335, %v303
  %v560 = vpack.c.b16 %v336, %v304
  %v561 = vpack.c.b16 %v337, %v305
  %v562 = vpack.c.b16 %v338, %v306
  %v563 = vpack.c.b16 %v339, %v307
  %v564 = vpack.c.b16 %v340, %v308
  %v565 = vpack.c.b16 %v341, %v309
  %v566 = vpack.c.b16 %v342, %v310
  %v567 = vpack.c.b16 %v343, %v311
  %v568 = vpack.c.b16 %v344, %v312
  %v569 = vpack.c.b16 %v345, %v313
  %v570 = vpack.c.b16 %v346, %v314
  %v571 = vpack.c.b16 %v347, %v315
  %v572 = vpack.c.b16 %v348, %v316
  %v573 = vpack.c.b16 %v349, %v317
  %v574 = vpack.c.b16 %v350, %v318
  %v575 = vpack.c.b16 %v351, %v319
  %v576 = vpack.c.b16 %v352, %v320
  %v577 = vpack.c.b16 %v353, %v321
  %v578 = vpack.c.b16 %v354, %v322
  %v579 = vpack.c.b16 %v387, %v355
  %v580 = vpack.c.b16 %v388, %v356
  %v581 = vpack.c.b16 %v389, %v357
  %v582 = vpack.c.b16 %v390, %v358
  %v583 = vpack.c.b16 %v391, %v359
  %v584 = vpack.c.b16 %v392, %v360
  %v585 = vpack.c.b16 %v393, %v361
  %v586 = vpack.c.b16 %v394, %v362
  %v587 = vpack.c.b16 %v395, %v363
  %v588 = vpack.c.b16 %v396, %v364
  %v589 = vpack.c.b16 %v397, %v365
  %v590 = vpack.c.b16 %v398, %v366
  %v591 = vpack.c.b16 %v399, %v367
  %v592 = vpack.c.b16 %v400, %v368
  %v593 = vpack.c.b16 %v401, %v369
  %v594 = vpack.c.b16 %v402, %v370
  %v595 = vpack.c.b16 %v403, %v371
  %v596 = vpack.c.b16 %v404, %v372
  %v597 = vpack.c.b16 %v405, %v373
  %v598 = vpack.c.b16 %v406, %v374
  %v599 = vpack.c.b16 %v407, %v375
  %v600 = vpack.c.b16 %v408, %v376
  %v601 = vpack.c.b16 %v409, %v377
  %v602 = vpack.c.b16 %v410, %v378
  %v603 = vpack.c.b16 %v411, %v379
  %v604 = vpack.c.b16 %v412, %v380
  %v605 = vpack.c.b16 %v413, %v381
  %v606 = vpack.c.b16 %v414, %v382
  %v607 = vpack.c.b16 %v415, %v383
  %v608 = vpack.c.b16 %v416, %v384
  %v609 = vpack.c.b16 %v417, %v385
  %v610 = vpack.c.b16 %v418, %v386
  %v611 = vpack.c.b16 %v451, %v419
  %v612 = vpack.c.b16 %v452, %v420
  %v613 = vpack.c.b16 %v453, %v421
  %v614 = vpack.c.b16 %v454, %v422
  %v615 = vpack.c.b16 %v455, %v423
  %v616 = vpack.c.b16 %v456, %v424
  %v617 = vpack.c.b16 %v457, %v425
  %v618 = vpack.c.b16 %v458, %v426
  %v619 = vpack.c.b16 %v459, %v427
  %v620 = vpack.c.b16 %v460, %v428
  %v621 = vpack.c.b16 %v461, %v429
  %v622 = vpack.c.b16 %v462, %v430
  %v623 = vpack.c.b16 %v463, %v431
  %v624 = vpack.c.b16 %v464, %v432
  %v625 = vpack.c.b16 %v465, %v433
  %v626 = vpack.c.b16 %v466, %v434
  %v627 = vpack.c.b16 %v467, %v435
  %v628 = vpack.c.b16 %v468, %v436
  %v629 = vpack.c.b16 %v469, %v437
  %v630 = vpack.c.b16 %v470, %v438
  %v631 = vpack.c.b16 %v471, %v439
  %v632 = vpack.c.b16 %v472, %v440
  %v633 = vpack.c.b16 %v473, %v441
  %v634 = vpack.c.b16 %v474, %v442
  %v635 = vpack.c.b16 %v475, %v443
  %v636 = vpack.c.b16 %v476, %v444
  %v637 = vpack.c.b16 %v477, %v445
  %v638 = vpack.c.b16 %v478, %v446
  %v639 = vpack.c.b16 %v479, %v447
  %v640 = vpack.c.b16 %v480, %v448
  %v641 = vpack.c.b16 %v481, %v449
  %v642 = vpack.c.b16 %v482, %v450
  %v643 = vpack.c.b16 %v515, %v483
  %v644 = vpack.c.b16 %v516, %v484
  %v645 = vpack.c.b16 %v517, %v485
  %v646 = vpack.c.b16 %v518, %v486
  %v647 = vpack.c.b16 %v519, %v487
  %v648 = vpack.c.b16 %v520, %v488
  %v649 = vpack.c.b16 %v521, %v489
  %v650 = vpack.c.b16 %v522, %v490
  %v651 = vpack.c.b16 %v523, %v491
  %v652 = vpack.c.b16 %v524, %v492
  %v653 = vpack.c.b16 %v525, %v493
  %v654 = vpack.c.b16 %v526, %v494
  %v655 = vpack.c.b16 %v527, %v495
  %v656 = vpack.c.b16 %v528, %v496
  %v657 = vpack.c.b16 %v529, %v497
  %v658 = vpack.c.b16 %v530, %v498
  %v659 = vpack.c.b16 %v531, %v499
  %v660 = vpack.c.b16 %v532, %v500
  %v661 = vpack.c.b16 %v533, %v501
  %v662 = vpack.c.b16 %v534, %v502
  %v663 = vpack.c.b16 %v535, %v503
  %v664 = vpack.c.b16 %v536, %v504
  %v665 = vpack.c.b16 %v537, %v505
  %v666 = vpack.c.b16 %v538, %v506
  %v667 = vpack.c.b16 %v539, %v507
  %v668 = vpack.c.b16 %v540, %v508
  %v669 = vpack.c.b16 %v541, %v509
  %v670 = vpack.c.b16 %v542, %v510
  %v671 = vpack.c.b16 %v543, %v511
  %v672 = vpack.c.b16 %v544, %v512
  %v673 = vpack.c.b16 %v545, %v513
  %v674 = vpack.c.b16 %v546, %v514
  %vm803 = vcmask 523264
  %v805 = vsel %vm803, %v34, 0
  %807 = vmatpush.bf16.msra.mxu0 0
  %808 = vmatpush.bf16.msra.mxu0 0
  %809 = vmatpush.bf16.msra.mxu0 0
  %810 = vmatpush.bf16.msra.mxu0 0
  %811 = vmatpush.bf16.msra.mxu0 %v643
  %812 = vmatpush.bf16.msra.mxu0 %v611
  %813 = vmatpush.bf16.msra.mxu0 %v579
  %814 = vmatpush.bf16.msra.mxu0 %v547
  %815 = vmatmul.bf16.gmra.mxu0 %v805
  %v816 = vpop.f32.mrf.mxu0
  %v817 = vadd.f32 0.0, %v816
  %v818 = vpop.f32.mrf.mxu0
  %819 = vdwg.mxu0
  %820 = vmatpush.bf16.msra.mxu0 0
  %821 = vmatpush.bf16.msra.mxu0 0
  %822 = vmatpush.bf16.msra.mxu0 0
  %823 = vmatpush.bf16.msra.mxu0 0
  %824 = vmatpush.bf16.msra.mxu0 %v644
  %825 = vmatpush.bf16.msra.mxu0 %v612
  %826 = vmatpush.bf16.msra.mxu0 %v580
  %827 = vmatpush.bf16.msra.mxu0 %v548
  %828 = vmatmul.bf16.gmra.mxu0 %v805
  %v829 = vpop.f32.mrf.mxu0
  %v830 = vadd.f32 0.0, %v829
  %v831 = vpop.f32.mrf.mxu0
  %832 = vdwg.mxu0
  %833 = vmatpush.bf16.msra.mxu0 0
  %834 = vmatpush.bf16.msra.mxu0 0
  %835 = vmatpush.bf16.msra.mxu0 0
  %836 = vmatpush.bf16.msra.mxu0 0
  %837 = vmatpush.bf16.msra.mxu0 %v645
  %838 = vmatpush.bf16.msra.mxu0 %v613
  %839 = vmatpush.bf16.msra.mxu0 %v581
  %840 = vmatpush.bf16.msra.mxu0 %v549
  %841 = vmatmul.bf16.gmra.mxu0 %v805
  %v842 = vpop.f32.mrf.mxu0
  %v843 = vadd.f32 0.0, %v842
  %v844 = vpop.f32.mrf.mxu0
  %845 = vdwg.mxu0
  %846 = vmatpush.bf16.msra.mxu0 0
  %847 = vmatpush.bf16.msra.mxu0 0
  %848 = vmatpush.bf16.msra.mxu0 0
  %849 = vmatpush.bf16.msra.mxu0 0
  %850 = vmatpush.bf16.msra.mxu0 %v646
  %851 = vmatpush.bf16.msra.mxu0 %v614
  %852 = vmatpush.bf16.msra.mxu0 %v582
  %853 = vmatpush.bf16.msra.mxu0 %v550
  %854 = vmatmul.bf16.gmra.mxu0 %v805
  %v855 = vpop.f32.mrf.mxu0
  %v856 = vadd.f32 0.0, %v855
  %v857 = vpop.f32.mrf.mxu0
  %858 = vdwg.mxu0
  %859 = vmatpush.bf16.msra.mxu0 0
  %860 = vmatpush.bf16.msra.mxu0 0
  %861 = vmatpush.bf16.msra.mxu0 0
  %862 = vmatpush.bf16.msra.mxu0 0
  %863 = vmatpush.bf16.msra.mxu0 %v647
  %864 = vmatpush.bf16.msra.mxu0 %v615
  %865 = vmatpush.bf16.msra.mxu0 %v583
  %866 = vmatpush.bf16.msra.mxu0 %v551
  %867 = vmatmul.bf16.gmra.mxu0 %v805
  %v868 = vpop.f32.mrf.mxu0
  %v869 = vadd.f32 0.0, %v868
  %v870 = vpop.f32.mrf.mxu0
  %871 = vdwg.mxu0
  %872 = vmatpush.bf16.msra.mxu0 0
  %873 = vmatpush.bf16.msra.mxu0 0
  %874 = vmatpush.bf16.msra.mxu0 0
  %875 = vmatpush.bf16.msra.mxu0 0
  %876 = vmatpush.bf16.msra.mxu0 %v648
  %877 = vmatpush.bf16.msra.mxu0 %v616
  %878 = vmatpush.bf16.msra.mxu0 %v584
  %879 = vmatpush.bf16.msra.mxu0 %v552
  %880 = vmatmul.bf16.gmra.mxu0 %v805
  %v881 = vpop.f32.mrf.mxu0
  %v882 = vadd.f32 0.0, %v881
  %v883 = vpop.f32.mrf.mxu0
  %884 = vdwg.mxu0
  %885 = vmatpush.bf16.msra.mxu0 0
  %886 = vmatpush.bf16.msra.mxu0 0
  %887 = vmatpush.bf16.msra.mxu0 0
  %888 = vmatpush.bf16.msra.mxu0 0
  %889 = vmatpush.bf16.msra.mxu0 %v649
  %890 = vmatpush.bf16.msra.mxu0 %v617
  %891 = vmatpush.bf16.msra.mxu0 %v585
  %892 = vmatpush.bf16.msra.mxu0 %v553
  %893 = vmatmul.bf16.gmra.mxu0 %v805
  %v894 = vpop.f32.mrf.mxu0
  %v895 = vadd.f32 0.0, %v894
  %v896 = vpop.f32.mrf.mxu0
  %897 = vdwg.mxu0
  %898 = vmatpush.bf16.msra.mxu0 0
  %899 = vmatpush.bf16.msra.mxu0 0
  %900 = vmatpush.bf16.msra.mxu0 0
  %901 = vmatpush.bf16.msra.mxu0 0
  %902 = vmatpush.bf16.msra.mxu0 %v650
  %903 = vmatpush.bf16.msra.mxu0 %v618
  %904 = vmatpush.bf16.msra.mxu0 %v586
  %905 = vmatpush.bf16.msra.mxu0 %v554
  %906 = vmatmul.bf16.gmra.mxu0 %v805
  %v907 = vpop.f32.mrf.mxu0
  %v908 = vadd.f32 0.0, %v907
  %v909 = vpop.f32.mrf.mxu0
  %910 = vdwg.mxu0
  %911 = vmatpush.bf16.msra.mxu0 0
  %912 = vmatpush.bf16.msra.mxu0 0
  %913 = vmatpush.bf16.msra.mxu0 0
  %914 = vmatpush.bf16.msra.mxu0 0
  %915 = vmatpush.bf16.msra.mxu0 %v651
  %916 = vmatpush.bf16.msra.mxu0 %v619
  %917 = vmatpush.bf16.msra.mxu0 %v587
  %918 = vmatpush.bf16.msra.mxu0 %v555
  %919 = vmatmul.bf16.gmra.mxu0 %v805
  %v920 = vpop.f32.mrf.mxu0
  %v921 = vadd.f32 0.0, %v920
  %v922 = vpop.f32.mrf.mxu0
  %923 = vdwg.mxu0
  %924 = vmatpush.bf16.msra.mxu0 0
  %925 = vmatpush.bf16.msra.mxu0 0
  %926 = vmatpush.bf16.msra.mxu0 0
  %927 = vmatpush.bf16.msra.mxu0 0
  %928 = vmatpush.bf16.msra.mxu0 %v652
  %929 = vmatpush.bf16.msra.mxu0 %v620
  %930 = vmatpush.bf16.msra.mxu0 %v588
  %931 = vmatpush.bf16.msra.mxu0 %v556
  %932 = vmatmul.bf16.gmra.mxu0 %v805
  %v933 = vpop.f32.mrf.mxu0
  %v934 = vadd.f32 0.0, %v933
  %v935 = vpop.f32.mrf.mxu0
  %936 = vdwg.mxu0
  %937 = vmatpush.bf16.msra.mxu0 0
  %938 = vmatpush.bf16.msra.mxu0 0
  %939 = vmatpush.bf16.msra.mxu0 0
  %940 = vmatpush.bf16.msra.mxu0 0
  %941 = vmatpush.bf16.msra.mxu0 %v653
  %942 = vmatpush.bf16.msra.mxu0 %v621
  %943 = vmatpush.bf16.msra.mxu0 %v589
  %944 = vmatpush.bf16.msra.mxu0 %v557
  %945 = vmatmul.bf16.gmra.mxu0 %v805
  %v946 = vpop.f32.mrf.mxu0
  %v947 = vadd.f32 0.0, %v946
  %v948 = vpop.f32.mrf.mxu0
  %949 = vdwg.mxu0
  %950 = vmatpush.bf16.msra.mxu0 0
  %951 = vmatpush.bf16.msra.mxu0 0
  %952 = vmatpush.bf16.msra.mxu0 0
  %953 = vmatpush.bf16.msra.mxu0 0
  %954 = vmatpush.bf16.msra.mxu0 %v654
  %955 = vmatpush.bf16.msra.mxu0 %v622
  %956 = vmatpush.bf16.msra.mxu0 %v590
  %957 = vmatpush.bf16.msra.mxu0 %v558
  %958 = vmatmul.bf16.gmra.mxu0 %v805
  %v959 = vpop.f32.mrf.mxu0
  %v960 = vadd.f32 0.0, %v959
  %v961 = vpop.f32.mrf.mxu0
  %962 = vdwg.mxu0
  %963 = vmatpush.bf16.msra.mxu0 0
  %964 = vmatpush.bf16.msra.mxu0 0
  %965 = vmatpush.bf16.msra.mxu0 0
  %966 = vmatpush.bf16.msra.mxu0 0
  %967 = vmatpush.bf16.msra.mxu0 %v655
  %968 = vmatpush.bf16.msra.mxu0 %v623
  %969 = vmatpush.bf16.msra.mxu0 %v591
  %970 = vmatpush.bf16.msra.mxu0 %v559
  %971 = vmatmul.bf16.gmra.mxu0 %v805
  %v972 = vpop.f32.mrf.mxu0
  %v973 = vadd.f32 0.0, %v972
  %v974 = vpop.f32.mrf.mxu0
  %975 = vdwg.mxu0
  %976 = vmatpush.bf16.msra.mxu0 0
  %977 = vmatpush.bf16.msra.mxu0 0
  %978 = vmatpush.bf16.msra.mxu0 0
  %979 = vmatpush.bf16.msra.mxu0 0
  %980 = vmatpush.bf16.msra.mxu0 %v656
  %981 = vmatpush.bf16.msra.mxu0 %v624
  %982 = vmatpush.bf16.msra.mxu0 %v592
  %983 = vmatpush.bf16.msra.mxu0 %v560
  %984 = vmatmul.bf16.gmra.mxu0 %v805
  %v985 = vpop.f32.mrf.mxu0
  %v986 = vadd.f32 0.0, %v985
  %v987 = vpop.f32.mrf.mxu0
  %988 = vdwg.mxu0
  %989 = vmatpush.bf16.msra.mxu0 0
  %990 = vmatpush.bf16.msra.mxu0 0
  %991 = vmatpush.bf16.msra.mxu0 0
  %992 = vmatpush.bf16.msra.mxu0 0
  %993 = vmatpush.bf16.msra.mxu0 %v657
  %994 = vmatpush.bf16.msra.mxu0 %v625
  %995 = vmatpush.bf16.msra.mxu0 %v593
  %996 = vmatpush.bf16.msra.mxu0 %v561
  %997 = vmatmul.bf16.gmra.mxu0 %v805
  %v998 = vpop.f32.mrf.mxu0
  %v999 = vadd.f32 0.0, %v998
  %v1000 = vpop.f32.mrf.mxu0
  %1001 = vdwg.mxu0
  %1002 = vmatpush.bf16.msra.mxu0 0
  %1003 = vmatpush.bf16.msra.mxu0 0
  %1004 = vmatpush.bf16.msra.mxu0 0
  %1005 = vmatpush.bf16.msra.mxu0 0
  %1006 = vmatpush.bf16.msra.mxu0 %v658
  %1007 = vmatpush.bf16.msra.mxu0 %v626
  %1008 = vmatpush.bf16.msra.mxu0 %v594
  %1009 = vmatpush.bf16.msra.mxu0 %v562
  %1010 = vmatmul.bf16.gmra.mxu0 %v805
  %v1011 = vpop.f32.mrf.mxu0
  %v1012 = vadd.f32 0.0, %v1011
  %v1013 = vpop.f32.mrf.mxu0
  %1014 = vdwg.mxu0
  %1015 = vmatpush.bf16.msra.mxu0 0
  %1016 = vmatpush.bf16.msra.mxu0 0
  %1017 = vmatpush.bf16.msra.mxu0 0
  %1018 = vmatpush.bf16.msra.mxu0 0
  %1019 = vmatpush.bf16.msra.mxu0 %v659
  %1020 = vmatpush.bf16.msra.mxu0 %v627
  %1021 = vmatpush.bf16.msra.mxu0 %v595
  %1022 = vmatpush.bf16.msra.mxu0 %v563
  %1023 = vmatmul.bf16.gmra.mxu0 %v805
  %v1024 = vpop.f32.mrf.mxu0
  %v1025 = vadd.f32 0.0, %v1024
  %v1026 = vpop.f32.mrf.mxu0
  %1027 = vdwg.mxu0
  %1028 = vmatpush.bf16.msra.mxu0 0
  %1029 = vmatpush.bf16.msra.mxu0 0
  %1030 = vmatpush.bf16.msra.mxu0 0
  %1031 = vmatpush.bf16.msra.mxu0 0
  %1032 = vmatpush.bf16.msra.mxu0 %v660
  %1033 = vmatpush.bf16.msra.mxu0 %v628
  %1034 = vmatpush.bf16.msra.mxu0 %v596
  %1035 = vmatpush.bf16.msra.mxu0 %v564
  %1036 = vmatmul.bf16.gmra.mxu0 %v805
  %v1037 = vpop.f32.mrf.mxu0
  %v1038 = vadd.f32 0.0, %v1037
  %v1039 = vpop.f32.mrf.mxu0
  %1040 = vdwg.mxu0
  %1041 = vmatpush.bf16.msra.mxu0 0
  %1042 = vmatpush.bf16.msra.mxu0 0
  %1043 = vmatpush.bf16.msra.mxu0 0
  %1044 = vmatpush.bf16.msra.mxu0 0
  %1045 = vmatpush.bf16.msra.mxu0 %v661
  %1046 = vmatpush.bf16.msra.mxu0 %v629
  %1047 = vmatpush.bf16.msra.mxu0 %v597
  %1048 = vmatpush.bf16.msra.mxu0 %v565
  %1049 = vmatmul.bf16.gmra.mxu0 %v805
  %v1050 = vpop.f32.mrf.mxu0
  %v1051 = vadd.f32 0.0, %v1050
  %v1052 = vpop.f32.mrf.mxu0
  %1053 = vdwg.mxu0
  %1054 = vmatpush.bf16.msra.mxu0 0
  %1055 = vmatpush.bf16.msra.mxu0 0
  %1056 = vmatpush.bf16.msra.mxu0 0
  %1057 = vmatpush.bf16.msra.mxu0 0
  %1058 = vmatpush.bf16.msra.mxu0 %v662
  %1059 = vmatpush.bf16.msra.mxu0 %v630
  %1060 = vmatpush.bf16.msra.mxu0 %v598
  %1061 = vmatpush.bf16.msra.mxu0 %v566
  %1062 = vmatmul.bf16.gmra.mxu0 %v805
  %v1063 = vpop.f32.mrf.mxu0
  %v1064 = vadd.f32 0.0, %v1063
  %v1065 = vpop.f32.mrf.mxu0
  %1066 = vdwg.mxu0
  %1067 = vmatpush.bf16.msra.mxu0 0
  %1068 = vmatpush.bf16.msra.mxu0 0
  %1069 = vmatpush.bf16.msra.mxu0 0
  %1070 = vmatpush.bf16.msra.mxu0 0
  %1071 = vmatpush.bf16.msra.mxu0 %v663
  %1072 = vmatpush.bf16.msra.mxu0 %v631
  %1073 = vmatpush.bf16.msra.mxu0 %v599
  %1074 = vmatpush.bf16.msra.mxu0 %v567
  %1075 = vmatmul.bf16.gmra.mxu0 %v805
  %v1076 = vpop.f32.mrf.mxu0
  %v1077 = vadd.f32 0.0, %v1076
  %v1078 = vpop.f32.mrf.mxu0
  %1079 = vdwg.mxu0
  %1080 = vmatpush.bf16.msra.mxu0 0
  %1081 = vmatpush.bf16.msra.mxu0 0
  %1082 = vmatpush.bf16.msra.mxu0 0
  %1083 = vmatpush.bf16.msra.mxu0 0
  %1084 = vmatpush.bf16.msra.mxu0 %v664
  %1085 = vmatpush.bf16.msra.mxu0 %v632
  %1086 = vmatpush.bf16.msra.mxu0 %v600
  %1087 = vmatpush.bf16.msra.mxu0 %v568
  %1088 = vmatmul.bf16.gmra.mxu0 %v805
  %v1089 = vpop.f32.mrf.mxu0
  %v1090 = vadd.f32 0.0, %v1089
  %v1091 = vpop.f32.mrf.mxu0
  %1092 = vdwg.mxu0
  %1093 = vmatpush.bf16.msra.mxu0 0
  %1094 = vmatpush.bf16.msra.mxu0 0
  %1095 = vmatpush.bf16.msra.mxu0 0
  %1096 = vmatpush.bf16.msra.mxu0 0
  %1097 = vmatpush.bf16.msra.mxu0 %v665
  %1098 = vmatpush.bf16.msra.mxu0 %v633
  %1099 = vmatpush.bf16.msra.mxu0 %v601
  %1100 = vmatpush.bf16.msra.mxu0 %v569
  %1101 = vmatmul.bf16.gmra.mxu0 %v805
  %v1102 = vpop.f32.mrf.mxu0
  %v1103 = vadd.f32 0.0, %v1102
  %v1104 = vpop.f32.mrf.mxu0
  %1105 = vdwg.mxu0
  %1106 = vmatpush.bf16.msra.mxu0 0
  %1107 = vmatpush.bf16.msra.mxu0 0
  %1108 = vmatpush.bf16.msra.mxu0 0
  %1109 = vmatpush.bf16.msra.mxu0 0
  %1110 = vmatpush.bf16.msra.mxu0 %v666
  %1111 = vmatpush.bf16.msra.mxu0 %v634
  %1112 = vmatpush.bf16.msra.mxu0 %v602
  %1113 = vmatpush.bf16.msra.mxu0 %v570
  %1114 = vmatmul.bf16.gmra.mxu0 %v805
  %v1115 = vpop.f32.mrf.mxu0
  %v1116 = vadd.f32 0.0, %v1115
  %v1117 = vpop.f32.mrf.mxu0
  %1118 = vdwg.mxu0
  %1119 = vmatpush.bf16.msra.mxu0 0
  %1120 = vmatpush.bf16.msra.mxu0 0
  %1121 = vmatpush.bf16.msra.mxu0 0
  %1122 = vmatpush.bf16.msra.mxu0 0
  %1123 = vmatpush.bf16.msra.mxu0 %v667
  %1124 = vmatpush.bf16.msra.mxu0 %v635
  %1125 = vmatpush.bf16.msra.mxu0 %v603
  %1126 = vmatpush.bf16.msra.mxu0 %v571
  %1127 = vmatmul.bf16.gmra.mxu0 %v805
  %v1128 = vpop.f32.mrf.mxu0
  %v1129 = vadd.f32 0.0, %v1128
  %v1130 = vpop.f32.mrf.mxu0
  %1131 = vdwg.mxu0
  %1132 = vmatpush.bf16.msra.mxu0 0
  %1133 = vmatpush.bf16.msra.mxu0 0
  %1134 = vmatpush.bf16.msra.mxu0 0
  %1135 = vmatpush.bf16.msra.mxu0 0
  %1136 = vmatpush.bf16.msra.mxu0 %v668
  %1137 = vmatpush.bf16.msra.mxu0 %v636
  %1138 = vmatpush.bf16.msra.mxu0 %v604
  %1139 = vmatpush.bf16.msra.mxu0 %v572
  %1140 = vmatmul.bf16.gmra.mxu0 %v805
  %v1141 = vpop.f32.mrf.mxu0
  %v1142 = vadd.f32 0.0, %v1141
  %v1143 = vpop.f32.mrf.mxu0
  %1144 = vdwg.mxu0
  %1145 = vmatpush.bf16.msra.mxu0 0
  %1146 = vmatpush.bf16.msra.mxu0 0
  %1147 = vmatpush.bf16.msra.mxu0 0
  %1148 = vmatpush.bf16.msra.mxu0 0
  %1149 = vmatpush.bf16.msra.mxu0 %v669
  %1150 = vmatpush.bf16.msra.mxu0 %v637
  %1151 = vmatpush.bf16.msra.mxu0 %v605
  %1152 = vmatpush.bf16.msra.mxu0 %v573
  %1153 = vmatmul.bf16.gmra.mxu0 %v805
  %v1154 = vpop.f32.mrf.mxu0
  %v1155 = vadd.f32 0.0, %v1154
  %v1156 = vpop.f32.mrf.mxu0
  %1157 = vdwg.mxu0
  %1158 = vmatpush.bf16.msra.mxu0 0
  %1159 = vmatpush.bf16.msra.mxu0 0
  %1160 = vmatpush.bf16.msra.mxu0 0
  %1161 = vmatpush.bf16.msra.mxu0 0
  %1162 = vmatpush.bf16.msra.mxu0 %v670
  %1163 = vmatpush.bf16.msra.mxu0 %v638
  %1164 = vmatpush.bf16.msra.mxu0 %v606
  %1165 = vmatpush.bf16.msra.mxu0 %v574
  %1166 = vmatmul.bf16.gmra.mxu0 %v805
  %v1167 = vpop.f32.mrf.mxu0
  %v1168 = vadd.f32 0.0, %v1167
  %v1169 = vpop.f32.mrf.mxu0
  %1170 = vdwg.mxu0
  %1171 = vmatpush.bf16.msra.mxu0 0
  %1172 = vmatpush.bf16.msra.mxu0 0
  %1173 = vmatpush.bf16.msra.mxu0 0
  %1174 = vmatpush.bf16.msra.mxu0 0
  %1175 = vmatpush.bf16.msra.mxu0 %v671
  %1176 = vmatpush.bf16.msra.mxu0 %v639
  %1177 = vmatpush.bf16.msra.mxu0 %v607
  %1178 = vmatpush.bf16.msra.mxu0 %v575
  %1179 = vmatmul.bf16.gmra.mxu0 %v805
  %v1180 = vpop.f32.mrf.mxu0
  %v1181 = vadd.f32 0.0, %v1180
  %v1182 = vpop.f32.mrf.mxu0
  %1183 = vdwg.mxu0
  %1184 = vmatpush.bf16.msra.mxu0 0
  %1185 = vmatpush.bf16.msra.mxu0 0
  %1186 = vmatpush.bf16.msra.mxu0 0
  %1187 = vmatpush.bf16.msra.mxu0 0
  %1188 = vmatpush.bf16.msra.mxu0 %v672
  %1189 = vmatpush.bf16.msra.mxu0 %v640
  %1190 = vmatpush.bf16.msra.mxu0 %v608
  %1191 = vmatpush.bf16.msra.mxu0 %v576
  %1192 = vmatmul.bf16.gmra.mxu0 %v805
  %v1193 = vpop.f32.mrf.mxu0
  %v1194 = vadd.f32 0.0, %v1193
  %v1195 = vpop.f32.mrf.mxu0
  %1196 = vdwg.mxu0
  %1197 = vmatpush.bf16.msra.mxu0 0
  %1198 = vmatpush.bf16.msra.mxu0 0
  %1199 = vmatpush.bf16.msra.mxu0 0
  %1200 = vmatpush.bf16.msra.mxu0 0
  %1201 = vmatpush.bf16.msra.mxu0 %v673
  %1202 = vmatpush.bf16.msra.mxu0 %v641
  %1203 = vmatpush.bf16.msra.mxu0 %v609
  %1204 = vmatpush.bf16.msra.mxu0 %v577
  %1205 = vmatmul.bf16.gmra.mxu0 %v805
  %v1206 = vpop.f32.mrf.mxu0
  %v1207 = vadd.f32 0.0, %v1206
  %v1208 = vpop.f32.mrf.mxu0
  %1209 = vdwg.mxu0
  %1210 = vmatpush.bf16.msra.mxu0 0
  %1211 = vmatpush.bf16.msra.mxu0 0
  %1212 = vmatpush.bf16.msra.mxu0 0
  %1213 = vmatpush.bf16.msra.mxu0 0
  %1214 = vmatpush.bf16.msra.mxu0 %v674
  %1215 = vmatpush.bf16.msra.mxu0 %v642
  %1216 = vmatpush.bf16.msra.mxu0 %v610
  %1217 = vmatpush.bf16.msra.mxu0 %v578
  %1218 = vmatmul.bf16.gmra.mxu0 %v805
  %v1219 = vpop.f32.mrf.mxu0
  %v1220 = vadd.f32 0.0, %v1219
  %v1221 = vpop.f32.mrf.mxu0
  %1222 = vdwg.mxu0
  %v1223 = vmax.f32 %v817, %v921
  %v1224 = vmax.f32 %v830, %v934
  %v1225 = vmax.f32 %v843, %v947
  %v1226 = vmax.f32 %v856, %v960
  %v1227 = vmax.f32 %v869, %v973
  %v1228 = vmax.f32 %v882, %v986
  %v1229 = vmax.f32 %v895, %v999
  %v1230 = vmax.f32 %v908, %v1012
  %v1231 = vmax.f32 %v1025, %v1129
  %v1232 = vmax.f32 %v1038, %v1142
  %v1233 = vmax.f32 %v1051, %v1155
  %v1234 = vmax.f32 %v1064, %v1168
  %v1235 = vmax.f32 %v1077, %v1181
  %v1236 = vmax.f32 %v1090, %v1194
  %v1237 = vmax.f32 %v1103, %v1207
  %v1238 = vmax.f32 %v1116, %v1220
  %v1239 = vmax.f32 %v1223, %v1231
  %v1240 = vmax.f32 %v1224, %v1232
  %v1241 = vmax.f32 %v1225, %v1233
  %v1242 = vmax.f32 %v1226, %v1234
  %v1243 = vmax.f32 %v1227, %v1235
  %v1244 = vmax.f32 %v1228, %v1236
  %v1245 = vmax.f32 %v1229, %v1237
  %v1246 = vmax.f32 %v1230, %v1238
  %v1247 = vld [vmem:[%s2] sm:$0xff]
  %v1249 = vperm.slane %v1247, 0
  %v1250 = vperm.slane %v1247, 1
  %v1251 = vperm.slane %v1247, 2
  %v1252 = vperm.slane %v1247, 3
  %v1253 = vperm.slane %v1247, 4
  %v1254 = vperm.slane %v1247, 5
  %v1255 = vperm.slane %v1247, 6
  %v1256 = vperm.slane %v1247, 7
  %v1265 = vadd.f32 %v1239, %v1249
  %v1266 = vadd.f32 %v1240, %v1250
  %v1267 = vadd.f32 %v1241, %v1251
  %v1268 = vadd.f32 %v1242, %v1252
  %v1269 = vadd.f32 %v1243, %v1253
  %v1270 = vadd.f32 %v1244, %v1254
  %v1271 = vadd.f32 %v1245, %v1255
  %v1272 = vadd.f32 %v1246, %v1256
  %v1273 = vmax.f32 %v1265, 0.0
  %v1274 = vmax.f32 %v1266, 0.0
  %v1275 = vmax.f32 %v1267, 0.0
  %v1276 = vmax.f32 %v1268, 0.0
  %v1277 = vmax.f32 %v1269, 0.0
  %v1278 = vmax.f32 %v1270, 0.0
  %v1279 = vmax.f32 %v1271, 0.0
  %v1280 = vmax.f32 %v1272, 0.0
  %v1281 = vpack.c.bf16 %v1273, %v1273
  %v1282 = vpack.c.bf16 %v1274, %v1274
  %v1283 = vpack.c.bf16 %v1275, %v1275
  %v1284 = vpack.c.bf16 %v1276, %v1276
  %v1285 = vpack.c.bf16 %v1277, %v1277
  %v1286 = vpack.c.bf16 %v1278, %v1278
  %v1287 = vpack.c.bf16 %v1279, %v1279
  %v1288 = vpack.c.bf16 %v1280, %v1280
  %v1289 = vld [vmem:[%s3] sm:$0xf]
  %v1290 = vld [vmem:[%s3 + $0x4] sm:$0xf]
  %v1291 = vld [vmem:[%s3 + $0x8] sm:$0xf]
  %v1292 = vld [vmem:[%s3 + $0xc] sm:$0xf]
  %v1293 = vld [vmem:[%s3 + $0x10] sm:$0xf]
  %v1294 = vld [vmem:[%s3 + $0x14] sm:$0xf]
  %v1295 = vld [vmem:[%s3 + $0x18] sm:$0xf]
  %v1296 = vld [vmem:[%s3 + $0x1c] sm:$0xf]
  %v1297 = vld [vmem:[%s3 + $0x20] sm:$0xf]
  %v1298 = vld [vmem:[%s3 + $0x24] sm:$0xf]
  %v1299 = vld [vmem:[%s3 + $0x28] sm:$0xf]
  %v1300 = vld [vmem:[%s3 + $0x2c] sm:$0xf]
  %v1301 = vld [vmem:[%s3 + $0x30] sm:$0xf]
  %v1302 = vld [vmem:[%s3 + $0x34] sm:$0xf]
  %v1303 = vld [vmem:[%s3 + $0x38] sm:$0xf]
  %v1304 = vld [vmem:[%s3 + $0x3c] sm:$0xf]
  %v1305 = vld [vmem:[%s3 + $0x40] sm:$0xf]
  %v1306 = vld [vmem:[%s3 + $0x44] sm:$0xf]
  %v1307 = vld [vmem:[%s3 + $0x48] sm:$0xf]
  %v1308 = vld [vmem:[%s3 + $0x4c] sm:$0xf]
  %v1309 = vld [vmem:[%s3 + $0x50] sm:$0xf]
  %v1310 = vld [vmem:[%s3 + $0x54] sm:$0xf]
  %v1311 = vld [vmem:[%s3 + $0x58] sm:$0xf]
  %v1312 = vld [vmem:[%s3 + $0x5c] sm:$0xf]
  %v1313 = vld [vmem:[%s3 + $0x60] sm:$0xf]
  %v1314 = vld [vmem:[%s3 + $0x64] sm:$0xf]
  %v1315 = vld [vmem:[%s3 + $0x68] sm:$0xf]
  %v1316 = vld [vmem:[%s3 + $0x6c] sm:$0xf]
  %v1317 = vld [vmem:[%s3 + $0x70] sm:$0xf]
  %v1318 = vld [vmem:[%s3 + $0x74] sm:$0xf]
  %v1319 = vld [vmem:[%s3 + $0x78] sm:$0xf]
  %v1320 = vld [vmem:[%s3 + $0x7c] sm:$0xf]
  %v1321 = vld [vmem:[%s3 + $0x80] sm:$0xf]
  %v1322 = vld [vmem:[%s3 + $0x84] sm:$0xf]
  %v1323 = vld [vmem:[%s3 + $0x88] sm:$0xf]
  %v1324 = vld [vmem:[%s3 + $0x8c] sm:$0xf]
  %v1325 = vld [vmem:[%s3 + $0x90] sm:$0xf]
  %v1326 = vld [vmem:[%s3 + $0x94] sm:$0xf]
  %v1327 = vld [vmem:[%s3 + $0x98] sm:$0xf]
  %v1328 = vld [vmem:[%s3 + $0x9c] sm:$0xf]
  %v1329 = vld [vmem:[%s3 + $0xa0] sm:$0xf]
  %v1330 = vld [vmem:[%s3 + $0xa4] sm:$0xf]
  %v1331 = vld [vmem:[%s3 + $0xa8] sm:$0xf]
  %v1332 = vld [vmem:[%s3 + $0xac] sm:$0xf]
  %v1333 = vld [vmem:[%s3 + $0xb0] sm:$0xf]
  %v1334 = vld [vmem:[%s3 + $0xb4] sm:$0xf]
  %v1335 = vld [vmem:[%s3 + $0xb8] sm:$0xf]
  %v1336 = vld [vmem:[%s3 + $0xbc] sm:$0xf]
  %v1337 = vld [vmem:[%s3 + $0xc0] sm:$0xf]
  %v1338 = vld [vmem:[%s3 + $0xc4] sm:$0xf]
  %v1339 = vld [vmem:[%s3 + $0xc8] sm:$0xf]
  %v1340 = vld [vmem:[%s3 + $0xcc] sm:$0xf]
  %v1341 = vld [vmem:[%s3 + $0xd0] sm:$0xf]
  %v1342 = vld [vmem:[%s3 + $0xd4] sm:$0xf]
  %v1343 = vld [vmem:[%s3 + $0xd8] sm:$0xf]
  %v1344 = vld [vmem:[%s3 + $0xdc] sm:$0xf]
  %v1345 = vld [vmem:[%s3 + $0xe0] sm:$0xf]
  %v1346 = vld [vmem:[%s3 + $0xe4] sm:$0xf]
  %v1347 = vld [vmem:[%s3 + $0xe8] sm:$0xf]
  %v1348 = vld [vmem:[%s3 + $0xec] sm:$0xf]
  %v1349 = vld [vmem:[%s3 + $0xf0] sm:$0xf]
  %v1350 = vld [vmem:[%s3 + $0xf4] sm:$0xf]
  %v1351 = vld [vmem:[%s3 + $0xf8] sm:$0xf]
  %v1352 = vld [vmem:[%s3 + $0xfc] sm:$0xf]
  %v1353 = vld [vmem:[%s3 + $0x100] sm:$0xf]
  %v1354 = vld [vmem:[%s3 + $0x104] sm:$0xf]
  %v1355 = vld [vmem:[%s3 + $0x108] sm:$0xf]
  %v1356 = vld [vmem:[%s3 + $0x10c] sm:$0xf]
  %v1357 = vld [vmem:[%s3 + $0x110] sm:$0xf]
  %v1358 = vld [vmem:[%s3 + $0x114] sm:$0xf]
  %v1359 = vld [vmem:[%s3 + $0x118] sm:$0xf]
  %v1360 = vld [vmem:[%s3 + $0x11c] sm:$0xf]
  %v1361 = vld [vmem:[%s3 + $0x120] sm:$0xf]
  %v1362 = vld [vmem:[%s3 + $0x124] sm:$0xf]
  %v1363 = vld [vmem:[%s3 + $0x128] sm:$0xf]
  %v1364 = vld [vmem:[%s3 + $0x12c] sm:$0xf]
  %v1365 = vld [vmem:[%s3 + $0x130] sm:$0xf]
  %v1366 = vld [vmem:[%s3 + $0x134] sm:$0xf]
  %v1367 = vld [vmem:[%s3 + $0x138] sm:$0xf]
  %v1368 = vld [vmem:[%s3 + $0x13c] sm:$0xf]
  %v1369 = vld [vmem:[%s3 + $0x140] sm:$0xf]
  %v1370 = vld [vmem:[%s3 + $0x144] sm:$0xf]
  %v1371 = vld [vmem:[%s3 + $0x148] sm:$0xf]
  %v1372 = vld [vmem:[%s3 + $0x14c] sm:$0xf]
  %v1373 = vld [vmem:[%s3 + $0x150] sm:$0xf]
  %v1374 = vld [vmem:[%s3 + $0x154] sm:$0xf]
  %v1375 = vld [vmem:[%s3 + $0x158] sm:$0xf]
  %v1376 = vld [vmem:[%s3 + $0x15c] sm:$0xf]
  %v1377 = vld [vmem:[%s3 + $0x160] sm:$0xf]
  %v1378 = vld [vmem:[%s3 + $0x164] sm:$0xf]
  %v1379 = vld [vmem:[%s3 + $0x168] sm:$0xf]
  %v1380 = vld [vmem:[%s3 + $0x16c] sm:$0xf]
  %v1381 = vld [vmem:[%s3 + $0x170] sm:$0xf]
  %v1382 = vld [vmem:[%s3 + $0x174] sm:$0xf]
  %v1383 = vld [vmem:[%s3 + $0x178] sm:$0xf]
  %v1384 = vld [vmem:[%s3 + $0x17c] sm:$0xf]
  %v1385 = vld [vmem:[%s3 + $0x180] sm:$0xf]
  %v1386 = vld [vmem:[%s3 + $0x184] sm:$0xf]
  %v1387 = vld [vmem:[%s3 + $0x188] sm:$0xf]
  %v1388 = vld [vmem:[%s3 + $0x18c] sm:$0xf]
  %v1389 = vld [vmem:[%s3 + $0x190] sm:$0xf]
  %v1390 = vld [vmem:[%s3 + $0x194] sm:$0xf]
  %v1391 = vld [vmem:[%s3 + $0x198] sm:$0xf]
  %v1392 = vld [vmem:[%s3 + $0x19c] sm:$0xf]
  %v1393 = vld [vmem:[%s3 + $0x1a0] sm:$0xf]
  %v1394 = vld [vmem:[%s3 + $0x1a4] sm:$0xf]
  %v1395 = vld [vmem:[%s3 + $0x1a8] sm:$0xf]
  %v1396 = vld [vmem:[%s3 + $0x1ac] sm:$0xf]
  %v1397 = vld [vmem:[%s3 + $0x1b0] sm:$0xf]
  %v1398 = vld [vmem:[%s3 + $0x1b4] sm:$0xf]
  %v1399 = vld [vmem:[%s3 + $0x1b8] sm:$0xf]
  %v1400 = vld [vmem:[%s3 + $0x1bc] sm:$0xf]
  %v1401 = vld [vmem:[%s3 + $0x1c0] sm:$0xf]
  %v1402 = vld [vmem:[%s3 + $0x1c4] sm:$0xf]
  %v1403 = vld [vmem:[%s3 + $0x1c8] sm:$0xf]
  %v1404 = vld [vmem:[%s3 + $0x1cc] sm:$0xf]
  %v1405 = vld [vmem:[%s3 + $0x1d0] sm:$0xf]
  %v1406 = vld [vmem:[%s3 + $0x1d4] sm:$0xf]
  %v1407 = vld [vmem:[%s3 + $0x1d8] sm:$0xf]
  %v1408 = vld [vmem:[%s3 + $0x1dc] sm:$0xf]
  %v1409 = vld [vmem:[%s3 + $0x1e0] sm:$0xf]
  %v1410 = vld [vmem:[%s3 + $0x1e4] sm:$0xf]
  %v1411 = vld [vmem:[%s3 + $0x1e8] sm:$0xf]
  %v1412 = vld [vmem:[%s3 + $0x1ec] sm:$0xf]
  %v1413 = vld [vmem:[%s3 + $0x1f0] sm:$0xf]
  %v1414 = vld [vmem:[%s3 + $0x1f4] sm:$0xf]
  %v1415 = vld [vmem:[%s3 + $0x1f8] sm:$0xf]
  %v1416 = vld [vmem:[%s3 + $0x1fc] sm:$0xf]
  %v1417 = vld [vmem:[%s4] sm:$0x1]
  %v1419 = vperm.slane %v1417, 0
  %v1549 = vunpack.c.l.b16 %v1289
  %v1550 = vunpack.c.l.b16 %v1290
  %v1551 = vunpack.c.l.b16 %v1291
  %v1552 = vunpack.c.l.b16 %v1292
  %v1553 = vunpack.c.l.b16 %v1293
  %v1554 = vunpack.c.l.b16 %v1294
  %v1555 = vunpack.c.l.b16 %v1295
  %v1556 = vunpack.c.l.b16 %v1296
  %v1557 = vunpack.c.l.b16 %v1297
  %v1558 = vunpack.c.l.b16 %v1298
  %v1559 = vunpack.c.l.b16 %v1299
  %v1560 = vunpack.c.l.b16 %v1300
  %v1561 = vunpack.c.l.b16 %v1301
  %v1562 = vunpack.c.l.b16 %v1302
  %v1563 = vunpack.c.l.b16 %v1303
  %v1564 = vunpack.c.l.b16 %v1304
  %v1565 = vunpack.c.l.b16 %v1305
  %v1566 = vunpack.c.l.b16 %v1306
  %v1567 = vunpack.c.l.b16 %v1307
  %v1568 = vunpack.c.l.b16 %v1308
  %v1569 = vunpack.c.l.b16 %v1309
  %v1570 = vunpack.c.l.b16 %v1310
  %v1571 = vunpack.c.l.b16 %v1311
  %v1572 = vunpack.c.l.b16 %v1312
  %v1573 = vunpack.c.l.b16 %v1313
  %v1574 = vunpack.c.l.b16 %v1314
  %v1575 = vunpack.c.l.b16 %v1315
  %v1576 = vunpack.c.l.b16 %v1316
  %v1577 = vunpack.c.l.b16 %v1317
  %v1578 = vunpack.c.l.b16 %v1318
  %v1579 = vunpack.c.l.b16 %v1319
  %v1580 = vunpack.c.l.b16 %v1320
  %v1581 = vunpack.c.l.b16 %v1321
  %v1582 = vunpack.c.l.b16 %v1322
  %v1583 = vunpack.c.l.b16 %v1323
  %v1584 = vunpack.c.l.b16 %v1324
  %v1585 = vunpack.c.l.b16 %v1325
  %v1586 = vunpack.c.l.b16 %v1326
  %v1587 = vunpack.c.l.b16 %v1327
  %v1588 = vunpack.c.l.b16 %v1328
  %v1589 = vunpack.c.l.b16 %v1329
  %v1590 = vunpack.c.l.b16 %v1330
  %v1591 = vunpack.c.l.b16 %v1331
  %v1592 = vunpack.c.l.b16 %v1332
  %v1593 = vunpack.c.l.b16 %v1333
  %v1594 = vunpack.c.l.b16 %v1334
  %v1595 = vunpack.c.l.b16 %v1335
  %v1596 = vunpack.c.l.b16 %v1336
  %v1597 = vunpack.c.l.b16 %v1337
  %v1598 = vunpack.c.l.b16 %v1338
  %v1599 = vunpack.c.l.b16 %v1339
  %v1600 = vunpack.c.l.b16 %v1340
  %v1601 = vunpack.c.l.b16 %v1341
  %v1602 = vunpack.c.l.b16 %v1342
  %v1603 = vunpack.c.l.b16 %v1343
  %v1604 = vunpack.c.l.b16 %v1344
  %v1605 = vunpack.c.l.b16 %v1345
  %v1606 = vunpack.c.l.b16 %v1346
  %v1607 = vunpack.c.l.b16 %v1347
  %v1608 = vunpack.c.l.b16 %v1348
  %v1609 = vunpack.c.l.b16 %v1349
  %v1610 = vunpack.c.l.b16 %v1350
  %v1611 = vunpack.c.l.b16 %v1351
  %v1612 = vunpack.c.l.b16 %v1352
  %v1613 = vunpack.c.l.b16 %v1353
  %v1614 = vunpack.c.l.b16 %v1354
  %v1615 = vunpack.c.l.b16 %v1355
  %v1616 = vunpack.c.l.b16 %v1356
  %v1617 = vunpack.c.l.b16 %v1357
  %v1618 = vunpack.c.l.b16 %v1358
  %v1619 = vunpack.c.l.b16 %v1359
  %v1620 = vunpack.c.l.b16 %v1360
  %v1621 = vunpack.c.l.b16 %v1361
  %v1622 = vunpack.c.l.b16 %v1362
  %v1623 = vunpack.c.l.b16 %v1363
  %v1624 = vunpack.c.l.b16 %v1364
  %v1625 = vunpack.c.l.b16 %v1365
  %v1626 = vunpack.c.l.b16 %v1366
  %v1627 = vunpack.c.l.b16 %v1367
  %v1628 = vunpack.c.l.b16 %v1368
  %v1629 = vunpack.c.l.b16 %v1369
  %v1630 = vunpack.c.l.b16 %v1370
  %v1631 = vunpack.c.l.b16 %v1371
  %v1632 = vunpack.c.l.b16 %v1372
  %v1633 = vunpack.c.l.b16 %v1373
  %v1634 = vunpack.c.l.b16 %v1374
  %v1635 = vunpack.c.l.b16 %v1375
  %v1636 = vunpack.c.l.b16 %v1376
  %v1637 = vunpack.c.l.b16 %v1377
  %v1638 = vunpack.c.l.b16 %v1378
  %v1639 = vunpack.c.l.b16 %v1379
  %v1640 = vunpack.c.l.b16 %v1380
  %v1641 = vunpack.c.l.b16 %v1381
  %v1642 = vunpack.c.l.b16 %v1382
  %v1643 = vunpack.c.l.b16 %v1383
  %v1644 = vunpack.c.l.b16 %v1384
  %v1645 = vunpack.c.l.b16 %v1385
  %v1646 = vunpack.c.l.b16 %v1386
  %v1647 = vunpack.c.l.b16 %v1387
  %v1648 = vunpack.c.l.b16 %v1388
  %v1649 = vunpack.c.l.b16 %v1389
  %v1650 = vunpack.c.l.b16 %v1390
  %v1651 = vunpack.c.l.b16 %v1391
  %v1652 = vunpack.c.l.b16 %v1392
  %v1653 = vunpack.c.l.b16 %v1393
  %v1654 = vunpack.c.l.b16 %v1394
  %v1655 = vunpack.c.l.b16 %v1395
  %v1656 = vunpack.c.l.b16 %v1396
  %v1657 = vunpack.c.l.b16 %v1397
  %v1658 = vunpack.c.l.b16 %v1398
  %v1659 = vunpack.c.l.b16 %v1399
  %v1660 = vunpack.c.l.b16 %v1400
  %v1661 = vunpack.c.l.b16 %v1401
  %v1662 = vunpack.c.l.b16 %v1402
  %v1663 = vunpack.c.l.b16 %v1403
  %v1664 = vunpack.c.l.b16 %v1404
  %v1665 = vunpack.c.l.b16 %v1405
  %v1666 = vunpack.c.l.b16 %v1406
  %v1667 = vunpack.c.l.b16 %v1407
  %v1668 = vunpack.c.l.b16 %v1408
  %v1669 = vunpack.c.l.b16 %v1409
  %v1670 = vunpack.c.l.b16 %v1410
  %v1671 = vunpack.c.l.b16 %v1411
  %v1672 = vunpack.c.l.b16 %v1412
  %v1673 = vunpack.c.l.b16 %v1413
  %v1674 = vunpack.c.l.b16 %v1414
  %v1675 = vunpack.c.l.b16 %v1415
  %v1676 = vunpack.c.l.b16 %v1416
  %v1677 = vpack.c.b16 %v1550, %v1549
  %v1678 = vpack.c.b16 %v1552, %v1551
  %v1679 = vpack.c.b16 %v1554, %v1553
  %v1680 = vpack.c.b16 %v1556, %v1555
  %v1681 = vpack.c.b16 %v1558, %v1557
  %v1682 = vpack.c.b16 %v1560, %v1559
  %v1683 = vpack.c.b16 %v1562, %v1561
  %v1684 = vpack.c.b16 %v1564, %v1563
  %v1685 = vpack.c.b16 %v1566, %v1565
  %v1686 = vpack.c.b16 %v1568, %v1567
  %v1687 = vpack.c.b16 %v1570, %v1569
  %v1688 = vpack.c.b16 %v1572, %v1571
  %v1689 = vpack.c.b16 %v1574, %v1573
  %v1690 = vpack.c.b16 %v1576, %v1575
  %v1691 = vpack.c.b16 %v1578, %v1577
  %v1692 = vpack.c.b16 %v1580, %v1579
  %v1693 = vpack.c.b16 %v1582, %v1581
  %v1694 = vpack.c.b16 %v1584, %v1583
  %v1695 = vpack.c.b16 %v1586, %v1585
  %v1696 = vpack.c.b16 %v1588, %v1587
  %v1697 = vpack.c.b16 %v1590, %v1589
  %v1698 = vpack.c.b16 %v1592, %v1591
  %v1699 = vpack.c.b16 %v1594, %v1593
  %v1700 = vpack.c.b16 %v1596, %v1595
  %v1701 = vpack.c.b16 %v1598, %v1597
  %v1702 = vpack.c.b16 %v1600, %v1599
  %v1703 = vpack.c.b16 %v1602, %v1601
  %v1704 = vpack.c.b16 %v1604, %v1603
  %v1705 = vpack.c.b16 %v1606, %v1605
  %v1706 = vpack.c.b16 %v1608, %v1607
  %v1707 = vpack.c.b16 %v1610, %v1609
  %v1708 = vpack.c.b16 %v1612, %v1611
  %v1709 = vpack.c.b16 %v1614, %v1613
  %v1710 = vpack.c.b16 %v1616, %v1615
  %v1711 = vpack.c.b16 %v1618, %v1617
  %v1712 = vpack.c.b16 %v1620, %v1619
  %v1713 = vpack.c.b16 %v1622, %v1621
  %v1714 = vpack.c.b16 %v1624, %v1623
  %v1715 = vpack.c.b16 %v1626, %v1625
  %v1716 = vpack.c.b16 %v1628, %v1627
  %v1717 = vpack.c.b16 %v1630, %v1629
  %v1718 = vpack.c.b16 %v1632, %v1631
  %v1719 = vpack.c.b16 %v1634, %v1633
  %v1720 = vpack.c.b16 %v1636, %v1635
  %v1721 = vpack.c.b16 %v1638, %v1637
  %v1722 = vpack.c.b16 %v1640, %v1639
  %v1723 = vpack.c.b16 %v1642, %v1641
  %v1724 = vpack.c.b16 %v1644, %v1643
  %v1725 = vpack.c.b16 %v1646, %v1645
  %v1726 = vpack.c.b16 %v1648, %v1647
  %v1727 = vpack.c.b16 %v1650, %v1649
  %v1728 = vpack.c.b16 %v1652, %v1651
  %v1729 = vpack.c.b16 %v1654, %v1653
  %v1730 = vpack.c.b16 %v1656, %v1655
  %v1731 = vpack.c.b16 %v1658, %v1657
  %v1732 = vpack.c.b16 %v1660, %v1659
  %v1733 = vpack.c.b16 %v1662, %v1661
  %v1734 = vpack.c.b16 %v1664, %v1663
  %v1735 = vpack.c.b16 %v1666, %v1665
  %v1736 = vpack.c.b16 %v1668, %v1667
  %v1737 = vpack.c.b16 %v1670, %v1669
  %v1738 = vpack.c.b16 %v1672, %v1671
  %v1739 = vpack.c.b16 %v1674, %v1673
  %v1740 = vpack.c.b16 %v1676, %v1675
  %1805 = vmatpush.bf16.msra.mxu0 %v1684
  %1806 = vmatpush.bf16.msra.mxu0 %v1683
  %1807 = vmatpush.bf16.msra.mxu0 %v1682
  %1808 = vmatpush.bf16.msra.mxu0 %v1681
  %1809 = vmatpush.bf16.msra.mxu0 %v1680
  %1810 = vmatpush.bf16.msra.mxu0 %v1679
  %1811 = vmatpush.bf16.msra.mxu0 %v1678
  %1812 = vmatpush.bf16.msra.mxu0 %v1677
  %1813 = vmatmul.bf16.gmra.mxu0 %v1281
  %v1814 = vpop.f32.mrf.mxu0
  %v1815 = vadd.f32 %v1419, %v1814
  %v1816 = vpop.f32.mrf.mxu0
  %1817 = vdwg.mxu0
  %1818 = vmatpush.bf16.msra.mxu0 %v1692
  %1819 = vmatpush.bf16.msra.mxu0 %v1691
  %1820 = vmatpush.bf16.msra.mxu0 %v1690
  %1821 = vmatpush.bf16.msra.mxu0 %v1689
  %1822 = vmatpush.bf16.msra.mxu0 %v1688
  %1823 = vmatpush.bf16.msra.mxu0 %v1687
  %1824 = vmatpush.bf16.msra.mxu0 %v1686
  %1825 = vmatpush.bf16.msra.mxu0 %v1685
  %1826 = vmatmul.bf16.gmra.mxu0 %v1282
  %v1827 = vpop.f32.mrf.mxu0
  %v1828 = vadd.f32 %v1815, %v1827
  %v1829 = vpop.f32.mrf.mxu0
  %1830 = vdwg.mxu0
  %1831 = vmatpush.bf16.msra.mxu0 %v1700
  %1832 = vmatpush.bf16.msra.mxu0 %v1699
  %1833 = vmatpush.bf16.msra.mxu0 %v1698
  %1834 = vmatpush.bf16.msra.mxu0 %v1697
  %1835 = vmatpush.bf16.msra.mxu0 %v1696
  %1836 = vmatpush.bf16.msra.mxu0 %v1695
  %1837 = vmatpush.bf16.msra.mxu0 %v1694
  %1838 = vmatpush.bf16.msra.mxu0 %v1693
  %1839 = vmatmul.bf16.gmra.mxu0 %v1283
  %v1840 = vpop.f32.mrf.mxu0
  %v1841 = vadd.f32 %v1828, %v1840
  %v1842 = vpop.f32.mrf.mxu0
  %1843 = vdwg.mxu0
  %1844 = vmatpush.bf16.msra.mxu0 %v1708
  %1845 = vmatpush.bf16.msra.mxu0 %v1707
  %1846 = vmatpush.bf16.msra.mxu0 %v1706
  %1847 = vmatpush.bf16.msra.mxu0 %v1705
  %1848 = vmatpush.bf16.msra.mxu0 %v1704
  %1849 = vmatpush.bf16.msra.mxu0 %v1703
  %1850 = vmatpush.bf16.msra.mxu0 %v1702
  %1851 = vmatpush.bf16.msra.mxu0 %v1701
  %1852 = vmatmul.bf16.gmra.mxu0 %v1284
  %v1853 = vpop.f32.mrf.mxu0
  %v1854 = vadd.f32 %v1841, %v1853
  %v1855 = vpop.f32.mrf.mxu0
  %1856 = vdwg.mxu0
  %1857 = vmatpush.bf16.msra.mxu0 %v1716
  %1858 = vmatpush.bf16.msra.mxu0 %v1715
  %1859 = vmatpush.bf16.msra.mxu0 %v1714
  %1860 = vmatpush.bf16.msra.mxu0 %v1713
  %1861 = vmatpush.bf16.msra.mxu0 %v1712
  %1862 = vmatpush.bf16.msra.mxu0 %v1711
  %1863 = vmatpush.bf16.msra.mxu0 %v1710
  %1864 = vmatpush.bf16.msra.mxu0 %v1709
  %1865 = vmatmul.bf16.gmra.mxu0 %v1285
  %v1866 = vpop.f32.mrf.mxu0
  %v1867 = vadd.f32 %v1854, %v1866
  %v1868 = vpop.f32.mrf.mxu0
  %1869 = vdwg.mxu0
  %1870 = vmatpush.bf16.msra.mxu0 %v1724
  %1871 = vmatpush.bf16.msra.mxu0 %v1723
  %1872 = vmatpush.bf16.msra.mxu0 %v1722
  %1873 = vmatpush.bf16.msra.mxu0 %v1721
  %1874 = vmatpush.bf16.msra.mxu0 %v1720
  %1875 = vmatpush.bf16.msra.mxu0 %v1719
  %1876 = vmatpush.bf16.msra.mxu0 %v1718
  %1877 = vmatpush.bf16.msra.mxu0 %v1717
  %1878 = vmatmul.bf16.gmra.mxu0 %v1286
  %v1879 = vpop.f32.mrf.mxu0
  %v1880 = vadd.f32 %v1867, %v1879
  %v1881 = vpop.f32.mrf.mxu0
  %1882 = vdwg.mxu0
  %1883 = vmatpush.bf16.msra.mxu0 %v1732
  %1884 = vmatpush.bf16.msra.mxu0 %v1731
  %1885 = vmatpush.bf16.msra.mxu0 %v1730
  %1886 = vmatpush.bf16.msra.mxu0 %v1729
  %1887 = vmatpush.bf16.msra.mxu0 %v1728
  %1888 = vmatpush.bf16.msra.mxu0 %v1727
  %1889 = vmatpush.bf16.msra.mxu0 %v1726
  %1890 = vmatpush.bf16.msra.mxu0 %v1725
  %1891 = vmatmul.bf16.gmra.mxu0 %v1287
  %v1892 = vpop.f32.mrf.mxu0
  %v1893 = vadd.f32 %v1880, %v1892
  %v1894 = vpop.f32.mrf.mxu0
  %1895 = vdwg.mxu0
  %1896 = vmatpush.bf16.msra.mxu0 %v1740
  %1897 = vmatpush.bf16.msra.mxu0 %v1739
  %1898 = vmatpush.bf16.msra.mxu0 %v1738
  %1899 = vmatpush.bf16.msra.mxu0 %v1737
  %1900 = vmatpush.bf16.msra.mxu0 %v1736
  %1901 = vmatpush.bf16.msra.mxu0 %v1735
  %1902 = vmatpush.bf16.msra.mxu0 %v1734
  %1903 = vmatpush.bf16.msra.mxu0 %v1733
  %1904 = vmatmul.bf16.gmra.mxu0 %v1288
  %v1905 = vpop.f32.mrf.mxu0
  %v1906 = vadd.f32 %v1893, %v1905
  %v1907 = vpop.f32.mrf.mxu0
  %1908 = vdwg.mxu0
  %v1909 = vmax.f32 %v1906, 0.0
  %v1910 = vpack.c.bf16 %v1909, %v1909
  %v1911 = vld [vmem:[%s5] sm:$0xf]
  %v1912 = vld [vmem:[%s5 + $0x4] sm:$0xf]
  %v1913 = vld [vmem:[%s5 + $0x8] sm:$0xf]
  %v1914 = vld [vmem:[%s5 + $0xc] sm:$0xf]
  %v1915 = vld [vmem:[%s5 + $0x10] sm:$0xf]
  %v1916 = vld [vmem:[%s5 + $0x14] sm:$0xf]
  %v1917 = vld [vmem:[%s5 + $0x18] sm:$0xf]
  %v1918 = vld [vmem:[%s5 + $0x1c] sm:$0xf]
  %v1919 = vld [vmem:[%s5 + $0x20] sm:$0xf]
  %v1920 = vld [vmem:[%s5 + $0x24] sm:$0xf]
  %v1921 = vld [vmem:[%s5 + $0x28] sm:$0xf]
  %v1922 = vld [vmem:[%s5 + $0x2c] sm:$0xf]
  %v1923 = vld [vmem:[%s5 + $0x30] sm:$0xf]
  %v1924 = vld [vmem:[%s5 + $0x34] sm:$0xf]
  %v1925 = vld [vmem:[%s5 + $0x38] sm:$0xf]
  %v1926 = vld [vmem:[%s5 + $0x3c] sm:$0xf]
  %v1927 = vld [vmem:[%s6] sm:$0x1]
  %v1929 = vperm.slane %v1927, 0
  %v1947 = vunpack.c.l.b16 %v1911
  %v1948 = vunpack.c.l.b16 %v1912
  %v1949 = vunpack.c.l.b16 %v1913
  %v1950 = vunpack.c.l.b16 %v1914
  %v1951 = vunpack.c.l.b16 %v1915
  %v1952 = vunpack.c.l.b16 %v1916
  %v1953 = vunpack.c.l.b16 %v1917
  %v1954 = vunpack.c.l.b16 %v1918
  %v1955 = vunpack.c.l.b16 %v1919
  %v1956 = vunpack.c.l.b16 %v1920
  %v1957 = vunpack.c.l.b16 %v1921
  %v1958 = vunpack.c.l.b16 %v1922
  %v1959 = vunpack.c.l.b16 %v1923
  %v1960 = vunpack.c.l.b16 %v1924
  %v1961 = vunpack.c.l.b16 %v1925
  %v1962 = vunpack.c.l.b16 %v1926
  %v1963 = vpack.c.b16 %v1948, %v1947
  %v1964 = vpack.c.b16 %v1950, %v1949
  %v1965 = vpack.c.b16 %v1952, %v1951
  %v1966 = vpack.c.b16 %v1954, %v1953
  %v1967 = vpack.c.b16 %v1956, %v1955
  %v1968 = vpack.c.b16 %v1958, %v1957
  %v1969 = vpack.c.b16 %v1960, %v1959
  %v1970 = vpack.c.b16 %v1962, %v1961
  %1979 = vmatpush.bf16.msra.mxu0 %v1970
  %1980 = vmatpush.bf16.msra.mxu0 %v1969
  %1981 = vmatpush.bf16.msra.mxu0 %v1968
  %1982 = vmatpush.bf16.msra.mxu0 %v1967
  %1983 = vmatpush.bf16.msra.mxu0 %v1966
  %1984 = vmatpush.bf16.msra.mxu0 %v1965
  %1985 = vmatpush.bf16.msra.mxu0 %v1964
  %1986 = vmatpush.bf16.msra.mxu0 %v1963
  %1987 = vmatmul.bf16.gmra.mxu0 %v1910
  %v1988 = vpop.f32.mrf.mxu0
  %v1989 = vadd.f32 %v1929, %v1988
  %v1990 = vpop.f32.mrf.mxu0
  %1991 = vdwg.mxu0
  %v1992 = vmax.f32 %v1989, 0.0
  %v1993 = vpack.c.bf16 %v1992, %v1992
  %v1994 = vld [vmem:[%s7] sm:$0xf]
  %v1995 = vld [vmem:[%s7 + $0x4] sm:$0xf]
  %v1996 = vld [vmem:[%s7 + $0x8] sm:$0xf]
  %v1997 = vld [vmem:[%s7 + $0xc] sm:$0xf]
  %v1998 = vld [vmem:[%s7 + $0x10] sm:$0xf]
  %v1999 = vld [vmem:[%s7 + $0x14] sm:$0xf]
  %v2000 = vld [vmem:[%s7 + $0x18] sm:$0xf]
  %v2001 = vld [vmem:[%s7 + $0x1c] sm:$0xf]
  %v2002 = vld [vmem:[%s8] sm:$0x1]
  %v2004 = vperm.slane %v2002, 0
  %v2014 = vunpack.c.l.b16 %v1994
  %v2015 = vunpack.c.l.b16 %v1995
  %v2016 = vunpack.c.l.b16 %v1996
  %v2017 = vunpack.c.l.b16 %v1997
  %v2018 = vunpack.c.l.b16 %v1998
  %v2019 = vunpack.c.l.b16 %v1999
  %v2020 = vunpack.c.l.b16 %v2000
  %v2021 = vunpack.c.l.b16 %v2001
  %v2022 = vpack.c.b16 %v2015, %v2014
  %v2023 = vpack.c.b16 %v2017, %v2016
  %v2024 = vpack.c.b16 %v2019, %v2018
  %v2025 = vpack.c.b16 %v2021, %v2020
  %v2031 = vsel %vm803, %v1993, 0
  %2033 = vmatpush.bf16.msra.mxu0 0
  %2034 = vmatpush.bf16.msra.mxu0 0
  %2035 = vmatpush.bf16.msra.mxu0 0
  %2036 = vmatpush.bf16.msra.mxu0 0
  %2037 = vmatpush.bf16.msra.mxu0 %v2025
  %2038 = vmatpush.bf16.msra.mxu0 %v2024
  %2039 = vmatpush.bf16.msra.mxu0 %v2023
  %2040 = vmatpush.bf16.msra.mxu0 %v2022
  %2041 = vmatmul.bf16.gmra.mxu0 %v2031
  %v2042 = vpop.f32.mrf.mxu0
  %v2043 = vadd.f32 %v2004, %v2042
  %v2044 = vpop.f32.mrf.mxu0
  %2045 = vdwg.mxu0
  %v2046 = vsub.f32 0.0, %v2043
  %v2047 = vmul.f32 %v2046, 1.442695
  %v2048 = vpow.pop %v2047
  %v2049 = vadd.f32 %v2048, 1.0
  %v2050 = vrcp.pop %v2049
  %v2051 = vmul.f32 %v2049, %v2050
  %v2052 = vsub.f32 1.0, %v2051
  %v2053 = vmul.f32 %v2050, %v2052
  %v2054 = vadd.f32 %v2050, %v2053
  %vm2055 = vweird.f32 %v2049
  %vm2056 = vweird.f32 %v2050
  %vm2057 = vmor %vm2055, %vm2056
  %v2058 = vsel %vm2057, %v2050, %v2054
  %v2059 = vand.u32 2147483647, %v2049
  %vm2060 = vcmp.eq.f32.partialorder %v2059, 8.507059e+37
  %v2061 = vand.u32 %v2049, 2147483648
  %v2062 = vor.u32 1.1754944e-38, %v2061
  %v2063 = vsel %vm2060, %v2062, %v2058
  %v2064 = vmul.f32 1.0, %v2063
  %2065 = vst [vmem:[%s9] sm:$0xff] %v2064
  // Predicated region
  $region38: #{_cnn2d_forward.1} parent=0 // pred_check
    _
  $region39: #{_cnn2d_forward.1} parent=0 // pred_check_branch
    %2067 = sbr.rel (0) target = $region41
  $region40: #{_cnn2d_forward.1} parent=0 // pred_region
    _
  $region41: #{_cnn2d_forward.1} parent=0 // pred_fallthru
    _
  // Predicated region
  $region42: #{_cnn2d_forward.1} parent=0 // pred_check
    _
  $region43: #{_cnn2d_forward.1} parent=0 // pred_check_branch
    %2069 = sbr.rel (0) target = $region45
  $region44: #{_cnn2d_forward.1} parent=0 // pred_region
    _
  $region45: #{_cnn2d_forward.1} parent=0 // pred_fallthru
    _

</llo_original>
